<compile_context>
chip_gen: v5e
topology: v5e:2x2
jax: 0.10.0
libtpu: 0.0.40
codegen_flags: <defaults>
</compile_context>

<pallas_src>
import functools

import jax
import jax.numpy as jnp
import numpy as np
from jax import lax
from jax.experimental import pallas as pl
from jax.experimental.pallas import tpu as pltpu

HIDDEN = 10           # self.hidden_dim in the PyTorch module
LSTM_IN = 256         # nn.LSTM(256, 10)
C1, C2 = 8, 16        # conv1 / conv2 output channels
GW = 32               # per-gate lane slot (>= HIDDEN); 4 * GW = 128 lanes
NG = 4 * GW
KPOS = ((0, 0), (0, 1), (1, 0), (1, 1))   # 2x2 kernel taps (ky, kx)


def _round_up(x, m):
    return -(-x // m) * m


def _sigmoid(x):
    # exp + approximate reciprocal: both run on the EUP slot, keeping the VALU free.
    return pl.reciprocal(1.0 + jnp.exp(-x), approx=True)


# ----------------------------- fused Pallas kernel -----------------------------

def _vip_fused_kernel(x_ref, m1_ref, b1_ref, sp1_ref, m2_ref, b2_ref,
                      wbig_ref, whh_ref, bg_ref, fcw_ref, fcb_ref,
                      out_ref, feats_ref, gx_ref,
                      *, B, NC, NB, Wp, W2p, L1, L1m, L2, L2m, LSTRIDE):
    f32 = jnp.float32
    bf16 = jnp.bfloat16

    xp = x_ref[...]                                   # (NB, Hp*Wp) bf16, all chunks

    # ---- conv1 (1->8, k=2, pad=1) + ReLU for ALL chunks at once:
    #      4 shifted lane slices contracted with kron(w_tap, I_NB) block matrices.
    shifts1 = (0, 1, Wp, Wp + 1)
    y1 = jnp.dot(m1_ref[0], xp[:, 0:L1], preferred_element_type=f32)
    for t in range(1, 4):
        d = shifts1[t]
        y1 = y1 + jnp.dot(m1_ref[t], xp[:, d:d + L1], preferred_element_type=f32)
    y1 = jnp.maximum(y1 + b1_ref[...], 0.0)           # (C1*NB, L1) f32

    # ---- maxpool 2x2/2: pairwise max of 4 shifted slices, then a 0/1 selection
    #      matmul that also zero-pads the pooled map for conv2.  Garbage
    #      (row-wrap) lanes of pm1 hit zero rows of sp1 and never contribute.
    pm1 = jnp.maximum(
        jnp.maximum(y1[:, 0:L1m], y1[:, 1:1 + L1m]),
        jnp.maximum(y1[:, Wp:Wp + L1m], y1[:, Wp + 1:Wp + 1 + L1m]))
    p1p = jnp.dot(pm1.astype(bf16), sp1_ref[...], preferred_element_type=f32)
    p1p = p1p.astype(bf16)                            # (C1*NB, S2)

    # ---- conv2 (8->16, k=2, pad=1) + ReLU.
    shifts2 = (0, 1, W2p, W2p + 1)
    y2 = jnp.dot(m2_ref[0], p1p[:, 0:L2], preferred_element_type=f32)
    for t in range(1, 4):
        d = shifts2[t]
        y2 = y2 + jnp.dot(m2_ref[t], p1p[:, d:d + L2], preferred_element_type=f32)
    y2 = jnp.maximum(y2 + b2_ref[...], 0.0)           # (C2*NB, L2) f32

    # ---- maxpool 2x2/2: pairwise max only; the stride-2 selection + NCHW
    #      flatten + LSTM input projection are folded into wbig below.
    pm2 = jnp.maximum(
        jnp.maximum(y2[:, 0:L2m], y2[:, 1:1 + L2m]),
        jnp.maximum(y2[:, W2p:W2p + L2m], y2[:, W2p + 1:W2p + 1 + L2m]))

    # ---- Pack the 16 conv2-channel row blocks into ONE lane-dense feature slab
    #      (rows = chunk*B + b, lanes = channel-major 128-wide blocks).  Both the
    #      wrap-around garbage lanes of pm2 and the [L2m, LSTRIDE) padding lanes
    #      multiply ZERO rows of wbig; the scratch is zero-filled once so no
    #      uninitialised NaN can reach the MXU.
    feats_ref[...] = jnp.zeros_like(feats_ref)
    for c in range(C2):
        feats_ref[:, c * LSTRIDE:c * LSTRIDE + L2m] = pm2[c * NB:(c + 1) * NB, :]

    # ---- SINGLE fused gate projection for all chunks and all 4 gates:
    #      (NB, C2*LSTRIDE) @ (C2*LSTRIDE, 128)  (replaces 16 tiny matmuls/chunk).
    gx = jnp.dot(feats_ref[...].astype(bf16), wbig_ref[...],
                 preferred_element_type=f32)          # (NB, NG)
    gx_ref[...] = gx.reshape(NC, B, NG)               # per-chunk gate inputs

    # ---- LSTM recurrence over chunks (the only sequential part).
    whh = whh_ref[...]                                # hoisted out of the loop
    bg = bg_ref[...]

    def lstm_step(t, carry):
        h, c = carry
        gates = gx_ref[t] + jnp.dot(h, whh, preferred_element_type=f32) + bg
        gs = _sigmoid(gates)                          # full-vreg transcendentals
        gt = jnp.tanh(gates)
        i_g = gs[:, 0 * GW:1 * GW]
        f_g = gs[:, 1 * GW:2 * GW]
        g_g = gt[:, 2 * GW:3 * GW]
        o_g = gs[:, 3 * GW:4 * GW]
        c_new = f_g * c + i_g * g_g
        h_new = o_g * jnp.tanh(c_new)
        return h_new, c_new

    h0 = jnp.zeros((B, GW), f32)
    c0 = jnp.zeros((B, GW), f32)
    h, _ = lax.fori_loop(0, NC, lstm_step, (h0, c0), unroll=True)

    # ---- final Linear (reldecision), lane-dense padded output (host slices it).
    out_ref[...] = (jnp.dot(h, fcw_ref[...], preferred_element_type=f32)
                    + fcb_ref[...])


# ----------------------------- host-side geometry & constants -----------------------------

def _geometry(split_h, W):
    Hp, Wp = split_h + 2, W + 2               # padded chunk
    S0 = Hp * Wp
    H1, W1 = Hp - 1, Wp - 1                   # conv1 output spatial
    P1h, P1w = H1 // 2, W1 // 2               # pool1 output (floor)
    L1 = (H1 - 1) * Wp + (W1 - 1) + 1
    L1m = 2 * (P1h - 1) * Wp + 2 * (P1w - 1) + 1
    H2p, W2p = P1h + 2, P1w + 2               # zero-padded pool1 map (conv2 input)
    S2 = H2p * W2p
    H2, W2 = H2p - 1, W2p - 1                 # conv2 output spatial
    P2h, P2w = H2 // 2, W2 // 2               # pool2 output (floor)
    L2 = (H2 - 1) * W2p + (W2 - 1) + 1
    L2m = 2 * (P2h - 1) * W2p + 2 * (P2w - 1) + 1
    return dict(Hp=Hp, Wp=Wp, S0=S0, P1h=P1h, P1w=P1w, L1=L1, L1m=L1m,
                H2p=H2p, W2p=W2p, S2=S2, P2h=P2h, P2w=P2w, L2=L2, L2m=L2m)


def _build_kernel_operands(params, NB, g, LSTRIDE, FPAD):
    f32 = jnp.float32
    bf16 = jnp.bfloat16
    eye_nb = jnp.eye(NB, dtype=f32)
    ones_nb = jnp.ones((NB, 1), f32)

    # Conv taps as block matrices over (channel * chunk*batch) rows: row = c*NB + r.
    w1 = params["conv1_w"].astype(f32)        # (8, 1, 2, 2)
    w2 = params["conv2_w"].astype(f32)        # (16, 8, 2, 2)
    m1 = jnp.stack([jnp.kron(w1[:, 0, ky, kx].reshape(C1, 1), eye_nb)
                    for (ky, kx) in KPOS])                       # (4, C1*NB, NB)
    b1r = jnp.kron(params["conv1_b"].reshape(C1, 1).astype(f32), ones_nb)
    m2 = jnp.stack([jnp.kron(w2[:, :, ky, kx], eye_nb)
                    for (ky, kx) in KPOS])                       # (4, C2*NB, C1*NB)
    b2r = jnp.kron(params["conv2_b"].reshape(C2, 1).astype(f32), ones_nb)

    # pool1 selection: lane 2u*Wp+2v of the pairwise-max map goes to lane
    # (u+1)*W2p+(v+1) of the zero-padded conv2 input frame (border stays 0).
    sp1 = np.zeros((g["L1m"], g["S2"]), np.float32)
    for u in range(g["P1h"]):
        for v in range(g["P1w"]):
            sp1[2 * u * g["Wp"] + 2 * v, (u + 1) * g["W2p"] + (v + 1)] = 1.0
    sp1 = jnp.asarray(sp1)

    # LSTM weights: gates (i, f, g, o) concatenated into 4 x GW lane slots.
    w_ih = params["lstm_w_ih"].astype(f32)    # (4*HIDDEN, 256)
    w_hh = params["lstm_w_hh"].astype(f32)    # (4*HIDDEN, HIDDEN)
    b_all = (params["lstm_b_ih"] + params["lstm_b_hh"]).astype(f32)
    wih_cat = jnp.zeros((LSTM_IN, NG), f32)
    whh_cat = jnp.zeros((GW, NG), f32)
    bg = jnp.zeros((1, NG), f32)
    for k in range(4):
        wih_cat = wih_cat.at[:, k * GW:k * GW + HIDDEN].set(
            w_ih[k * HIDDEN:(k + 1) * HIDDEN, :].T)
        whh_cat = whh_cat.at[:HIDDEN, k * GW:k * GW + HIDDEN].set(
            w_hh[k * HIDDEN:(k + 1) * HIDDEN, :].T)
        bg = bg.at[0, k * GW:k * GW + HIDDEN].set(
            b_all[k * HIDDEN:(k + 1) * HIDDEN])

    # Fold pool2's stride-2 selection + NCHW flatten into one big gate weight:
    # row c*LSTRIDE + (2u*W2p+2v) of wbig = W_ih row c*(P2h*P2w) + u*P2w + v,
    # matching the lane layout of the packed feats slab built in-kernel.
    n_sp = g["P2h"] * g["P2w"]
    assert C2 * n_sp == LSTM_IN, (C2, n_sp)
    row_idx = np.array([c * LSTRIDE + 2 * u * g["W2p"] + 2 * v
                        for c in range(C2)
                        for u in range(g["P2h"])
                        for v in range(g["P2w"])], dtype=np.int32)
    wbig = jnp.zeros((C2 * LSTRIDE, NG), f32)
    wbig = wbig.at[jnp.asarray(row_idx), :].set(wih_cat)         # (C2*LSTRIDE, NG)

    # Final Linear, padded to (GW, FPAD) so the output store is lane-dense.
    feature_size = params["fc_b"].shape[0]
    fcw = jnp.zeros((GW, FPAD), f32)
    fcw = fcw.at[:HIDDEN, :feature_size].set(params["fc_w"].astype(f32).T)
    fcb = jnp.zeros((1, FPAD), f32)
    fcb = fcb.at[0, :feature_size].set(params["fc_b"].astype(f32))

    # bf16 for all big MXU operands (f32 accumulation in-kernel); small
    # recurrent / bias / FC tensors stay f32 (v5e-friendly elementwise path).
    return (m1.astype(bf16), b1r, sp1.astype(bf16), m2.astype(bf16), b2r,
            wbig.astype(bf16), whh_cat, bg, fcw, fcb)


# ----------------------------- forward -----------------------------

def vip_features_forward(params, x, region_height):
    # x: (B, 1, H, W) NCHW, mirrors the PyTorch forward.
    B, cin, H, W = x.shape
    assert cin == 1
    split_h = H // region_height              # `splits` in the PyTorch code
    assert split_h > 0 and H % split_h == 0
    NC = H // split_h                         # number of torch.split chunks
    NB = NC * B                               # chunk-batched row count

    g = _geometry(split_h, W)
    assert C2 * g["P2h"] * g["P2w"] == LSTM_IN, "chunk geometry must yield 256 feats"
    feature_size = params["fc_b"].shape[0]
    FPAD = _round_up(max(feature_size, 1), 128)
    LSTRIDE = _round_up(g["L2m"], 128)        # 128-aligned per-channel lane block

    operands = _build_kernel_operands(params, NB, g, LSTRIDE, FPAD)

    # Chunk + zero-pad the input once on the host: rows ordered chunk*B + b.
    xc = x[:, 0, :, :].reshape(B, NC, split_h, W).transpose(1, 0, 2, 3)
    xc = jnp.pad(xc, ((0, 0), (0, 0), (1, 1), (1, 1)))
    xch = xc.reshape(NB, g["S0"]).astype(jnp.bfloat16)

    kernel = functools.partial(
        _vip_fused_kernel, B=B, NC=NC, NB=NB, Wp=g["Wp"], W2p=g["W2p"],
        L1=g["L1"], L1m=g["L1m"], L2=g["L2"], L2m=g["L2m"], LSTRIDE=LSTRIDE)

    # Single invocation, no grid: every array is a full-block VMEM resident
    # (total < 1 MiB), so there is no pipelining / double-buffering at all.
    # TODO(synk): on v7x, shard the batch across the two TensorCores with a
    # 'parallel' grid axis (per-core h/c scratch); B=2 here makes it moot.
    out_pad = pl.pallas_call(
        kernel,
        out_shape=jax.ShapeDtypeStruct((B, FPAD), jnp.float32),
        scratch_shapes=[pltpu.VMEM((NB, C2 * LSTRIDE), jnp.float32),  # feats slab
                        pltpu.VMEM((NC, B, NG), jnp.float32)],        # per-chunk gates
    )(xch, *operands)

    return out_pad[:, :feature_size]           # tag_space: (B, feature_size)


# ----------------------------- pure-JAX reference (for correctness check) -----------------------------

def vip_features_reference(params, x, region_height):
    B, _, H, W = x.shape
    split_h = H // region_height
    num_chunks = H // split_h
    w_ih, w_hh = params["lstm_w_ih"], params["lstm_w_hh"]
    b_g = params["lstm_b_ih"] + params["lstm_b_hh"]
    h = jnp.zeros((B, HIDDEN), jnp.float32)
    c = jnp.zeros((B, HIDDEN), jnp.float32)
    hi = jax.lax.Precision.HIGHEST

    def conv2x2_relu(xn, w, bias):
        xpad = jnp.pad(xn, ((0, 0), (0, 0), (1, 1), (1, 1)))
        y = jax.lax.conv_general_dilated(
            xpad, w, (1, 1), "VALID",
            dimension_numbers=("NCHW", "OIHW", "NCHW"), precision=hi)
        return jnp.maximum(y + bias[None, :, None, None], 0.0)

    def maxpool2(xn):
        b_, c_, hh, ww = xn.shape
        ho, wo = hh // 2, ww // 2
        xcrop = xn[:, :, :2 * ho, :2 * wo].reshape(b_, c_, ho, 2, wo, 2)
        return xcrop.max(axis=(3, 5))

    for i in range(num_chunks):
        chunk = x[:, :, i * split_h:(i + 1) * split_h, :]
        y = maxpool2(conv2x2_relu(chunk, params["conv1_w"], params["conv1_b"]))
        y = maxpool2(conv2x2_relu(y, params["conv2_w"], params["conv2_b"]))
        feats = y.reshape(B, -1)               # NCHW flatten == view(1, -1, 256)
        gates = (jnp.dot(feats, w_ih.T, precision=hi)
                 + jnp.dot(h, w_hh.T, precision=hi) + b_g)
        i_g = jax.nn.sigmoid(gates[:, 0:HIDDEN])
        f_g = jax.nn.sigmoid(gates[:, HIDDEN:2 * HIDDEN])
        g_g = jnp.tanh(gates[:, 2 * HIDDEN:3 * HIDDEN])
        o_g = jax.nn.sigmoid(gates[:, 3 * HIDDEN:4 * HIDDEN])
        c = f_g * c + i_g * g_g
        h = o_g * jnp.tanh(c)
    return jnp.dot(h, params["fc_w"].T, precision=hi) + params["fc_b"][None, :]


# ----------------------------- parameters -----------------------------

def init_params(key, feature_size):
    ks = jax.random.split(key, 10)

    def u(k, shape, fan_in):
        bound = 1.0 / (fan_in ** 0.5)
        return jax.random.uniform(k, shape, jnp.float32, -bound, bound)

    return {
        "conv1_w": u(ks[0], (C1, 1, 2, 2), 1 * 2 * 2),
        "conv1_b": u(ks[1], (C1,), 1 * 2 * 2),
        "conv2_w": u(ks[2], (C2, C1, 2, 2), C1 * 2 * 2),
        "conv2_b": u(ks[3], (C2,), C1 * 2 * 2),
        "lstm_w_ih": u(ks[4], (4 * HIDDEN, LSTM_IN), HIDDEN),
        "lstm_w_hh": u(ks[5], (4 * HIDDEN, HIDDEN), HIDDEN),
        "lstm_b_ih": u(ks[6], (4 * HIDDEN,), HIDDEN),
        "lstm_b_hh": u(ks[7], (4 * HIDDEN,), HIDDEN),
        "fc_w": u(ks[8], (feature_size, HIDDEN), HIDDEN),
        "fc_b": u(ks[9], (feature_size,), HIDDEN),
    }


if __name__ == "__main__":
    # Chunk height 14, width 14 so the local perception layer yields
    # 16*4*4 = 256 features per sample (required by nn.LSTM(256, 10));
    # region_height=2 -> two height chunks of 14.
    B, H, W = 2, 28, 14
    region_height = 2
    feature_size = 4

    key = jax.random.PRNGKey(0)
    kx, kp = jax.random.split(key)
    x = jax.random.normal(kx, (B, 1, H, W), jnp.float32)
    params = init_params(kp, feature_size)

    fwd = jax.jit(vip_features_forward, static_argnums=2)
    out = jax.block_until_ready(fwd(params, x, region_height))
    assert out.shape == (B, feature_size)
    assert bool(jnp.all(jnp.isfinite(out)))

    ref = jax.block_until_ready(vip_features_reference(params, x, region_height))
    assert jnp.allclose(out, ref, rtol=2e-2, atol=2e-2), (out, ref)
    print("KERNEL_OK")
</pallas_src>

<mosaic_0001>
module attributes {stable_mosaic.version = 11 : i64} {
  func.func @_vip_fused_kernel(%arg0: memref<4x256xbf16, #tpu.memory_space<vmem>>, %arg1: memref<4x32x4xbf16, #tpu.memory_space<vmem>>, %arg2: memref<32x1xf32, #tpu.memory_space<vmem>>, %arg3: memref<205x81xbf16, #tpu.memory_space<vmem>>, %arg4: memref<4x64x32xbf16, #tpu.memory_space<vmem>>, %arg5: memref<64x1xf32, #tpu.memory_space<vmem>>, %arg6: memref<2048x128xbf16, #tpu.memory_space<vmem>>, %arg7: memref<32x128xf32, #tpu.memory_space<vmem>>, %arg8: memref<1x128xf32, #tpu.memory_space<vmem>>, %arg9: memref<32x128xf32, #tpu.memory_space<vmem>>, %arg10: memref<1x128xf32, #tpu.memory_space<vmem>>, %arg11: memref<2x128xf32, #tpu.memory_space<vmem>>, %arg12: memref<4x2048xf32, #tpu.memory_space<vmem>>, %arg13: memref<2x2x128xf32, #tpu.memory_space<vmem>>) attributes {dimension_semantics = [], scalar_prefetch = 0 : i64, scratch_operands = 2 : i64, tpu.core_type = #tpu.core_type<tc>} {
    %c0 = arith.constant 0 : index
    %c0_0 = arith.constant 0 : index
    %0 = vector.load %arg0[%c0, %c0_0] : memref<4x256xbf16, #tpu.memory_space<vmem>>, vector<4x256xbf16>
    %c0_1 = arith.constant 0 : index
    %c0_2 = arith.constant 0 : index
    %c0_3 = arith.constant 0 : index
    %1 = vector.load %arg1[%c0_1, %c0_2, %c0_3] : memref<4x32x4xbf16, #tpu.memory_space<vmem>>, vector<1x32x4xbf16>
    %2 = vector.shape_cast %1 : vector<1x32x4xbf16> to vector<32x4xbf16>
    %3 = vector.extract_strided_slice %0 {offsets = [0, 0], sizes = [4, 239], strides = [1, 1]} : vector<4x256xbf16> to vector<4x239xbf16>
    %cst = arith.constant dense<0.000000e+00> : vector<32x239xf32>
    %4 = tpu.matmul %2, %3, %cst {dimension_numbers = #tpu.dot_dimension_numbers<[1], [0], [0], [1], [0, 0, 1, 1], [], []>} : vector<32x4xbf16>, vector<4x239xbf16>, vector<32x239xf32> -> vector<32x239xf32>
    %c1 = arith.constant 1 : index
    %c0_4 = arith.constant 0 : index
    %c0_5 = arith.constant 0 : index
    %5 = vector.load %arg1[%c1, %c0_4, %c0_5] : memref<4x32x4xbf16, #tpu.memory_space<vmem>>, vector<1x32x4xbf16>
    %6 = vector.shape_cast %5 : vector<1x32x4xbf16> to vector<32x4xbf16>
    %7 = vector.extract_strided_slice %0 {offsets = [0, 1], sizes = [4, 239], strides = [1, 1]} : vector<4x256xbf16> to vector<4x239xbf16>
    %cst_6 = arith.constant dense<0.000000e+00> : vector<32x239xf32>
    %8 = tpu.matmul %6, %7, %cst_6 {dimension_numbers = #tpu.dot_dimension_numbers<[1], [0], [0], [1], [0, 0, 1, 1], [], []>} : vector<32x4xbf16>, vector<4x239xbf16>, vector<32x239xf32> -> vector<32x239xf32>
    %9 = arith.addf %4, %8 : vector<32x239xf32>
    %c2 = arith.constant 2 : index
    %c0_7 = arith.constant 0 : index
    %c0_8 = arith.constant 0 : index
    %10 = vector.load %arg1[%c2, %c0_7, %c0_8] : memref<4x32x4xbf16, #tpu.memory_space<vmem>>, vector<1x32x4xbf16>
    %11 = vector.shape_cast %10 : vector<1x32x4xbf16> to vector<32x4xbf16>
    %12 = vector.extract_strided_slice %0 {offsets = [0, 16], sizes = [4, 239], strides = [1, 1]} : vector<4x256xbf16> to vector<4x239xbf16>
    %cst_9 = arith.constant dense<0.000000e+00> : vector<32x239xf32>
    %13 = tpu.matmul %11, %12, %cst_9 {dimension_numbers = #tpu.dot_dimension_numbers<[1], [0], [0], [1], [0, 0, 1, 1], [], []>} : vector<32x4xbf16>, vector<4x239xbf16>, vector<32x239xf32> -> vector<32x239xf32>
    %14 = arith.addf %9, %13 : vector<32x239xf32>
    %c3 = arith.constant 3 : index
    %c0_10 = arith.constant 0 : index
    %c0_11 = arith.constant 0 : index
    %15 = vector.load %arg1[%c3, %c0_10, %c0_11] : memref<4x32x4xbf16, #tpu.memory_space<vmem>>, vector<1x32x4xbf16>
    %16 = vector.shape_cast %15 : vector<1x32x4xbf16> to vector<32x4xbf16>
    %17 = vector.extract_strided_slice %0 {offsets = [0, 17], sizes = [4, 239], strides = [1, 1]} : vector<4x256xbf16> to vector<4x239xbf16>
    %cst_12 = arith.constant dense<0.000000e+00> : vector<32x239xf32>
    %18 = tpu.matmul %16, %17, %cst_12 {dimension_numbers = #tpu.dot_dimension_numbers<[1], [0], [0], [1], [0, 0, 1, 1], [], []>} : vector<32x4xbf16>, vector<4x239xbf16>, vector<32x239xf32> -> vector<32x239xf32>
    %19 = arith.addf %14, %18 : vector<32x239xf32>
    %c0_13 = arith.constant 0 : index
    %c0_14 = arith.constant 0 : index
    %20 = vector.load %arg2[%c0_13, %c0_14] : memref<32x1xf32, #tpu.memory_space<vmem>>, vector<32x1xf32>
    %21 = vector.broadcast %20 : vector<32x1xf32> to vector<32x239xf32>
    %22 = arith.addf %19, %21 : vector<32x239xf32>
    %cst_15 = arith.constant 0.000000e+00 : f32
    %23 = vector.broadcast %cst_15 : f32 to vector<32x239xf32>
    %24 = arith.maximumf %22, %23 : vector<32x239xf32>
    %25 = vector.extract_strided_slice %24 {offsets = [0, 0], sizes = [32, 205], strides = [1, 1]} : vector<32x239xf32> to vector<32x205xf32>
    %26 = vector.extract_strided_slice %24 {offsets = [0, 1], sizes = [32, 205], strides = [1, 1]} : vector<32x239xf32> to vector<32x205xf32>
    %27 = arith.maximumf %25, %26 : vector<32x205xf32>
    %28 = vector.extract_strided_slice %24 {offsets = [0, 16], sizes = [32, 205], strides = [1, 1]} : vector<32x239xf32> to vector<32x205xf32>
    %29 = vector.extract_strided_slice %24 {offsets = [0, 17], sizes = [32, 205], strides = [1, 1]} : vector<32x239xf32> to vector<32x205xf32>
    %30 = arith.maximumf %28, %29 : vector<32x205xf32>
    %31 = arith.maximumf %27, %30 : vector<32x205xf32>
    %32 = arith.truncf %31 : vector<32x205xf32> to vector<32x205xbf16>
    %c0_16 = arith.constant 0 : index
    %c0_17 = arith.constant 0 : index
    %33 = vector.load %arg3[%c0_16, %c0_17] : memref<205x81xbf16, #tpu.memory_space<vmem>>, vector<205x81xbf16>
    %cst_18 = arith.constant dense<0.000000e+00> : vector<32x81xf32>
    %34 = tpu.matmul %32, %33, %cst_18 {dimension_numbers = #tpu.dot_dimension_numbers<[1], [0], [0], [1], [0, 0, 1, 1], [], []>} : vector<32x205xbf16>, vector<205x81xbf16>, vector<32x81xf32> -> vector<32x81xf32>
    %35 = arith.truncf %34 : vector<32x81xf32> to vector<32x81xbf16>
    %c0_19 = arith.constant 0 : index
    %c0_20 = arith.constant 0 : index
    %c0_21 = arith.constant 0 : index
    %36 = vector.load %arg4[%c0_19, %c0_20, %c0_21] : memref<4x64x32xbf16, #tpu.memory_space<vmem>>, vector<1x64x32xbf16>
    %37 = vector.shape_cast %36 : vector<1x64x32xbf16> to vector<64x32xbf16>
    %38 = vector.extract_strided_slice %35 {offsets = [0, 0], sizes = [32, 71], strides = [1, 1]} : vector<32x81xbf16> to vector<32x71xbf16>
    %cst_22 = arith.constant dense<0.000000e+00> : vector<64x71xf32>
    %39 = tpu.matmul %37, %38, %cst_22 {dimension_numbers = #tpu.dot_dimension_numbers<[1], [0], [0], [1], [0, 0, 1, 1], [], []>} : vector<64x32xbf16>, vector<32x71xbf16>, vector<64x71xf32> -> vector<64x71xf32>
    %c1_23 = arith.constant 1 : index
    %c0_24 = arith.constant 0 : index
    %c0_25 = arith.constant 0 : index
    %40 = vector.load %arg4[%c1_23, %c0_24, %c0_25] : memref<4x64x32xbf16, #tpu.memory_space<vmem>>, vector<1x64x32xbf16>
    %41 = vector.shape_cast %40 : vector<1x64x32xbf16> to vector<64x32xbf16>
    %42 = vector.extract_strided_slice %35 {offsets = [0, 1], sizes = [32, 71], strides = [1, 1]} : vector<32x81xbf16> to vector<32x71xbf16>
    %cst_26 = arith.constant dense<0.000000e+00> : vector<64x71xf32>
    %43 = tpu.matmul %41, %42, %cst_26 {dimension_numbers = #tpu.dot_dimension_numbers<[1], [0], [0], [1], [0, 0, 1, 1], [], []>} : vector<64x32xbf16>, vector<32x71xbf16>, vector<64x71xf32> -> vector<64x71xf32>
    %44 = arith.addf %39, %43 : vector<64x71xf32>
    %c2_27 = arith.constant 2 : index
    %c0_28 = arith.constant 0 : index
    %c0_29 = arith.constant 0 : index
    %45 = vector.load %arg4[%c2_27, %c0_28, %c0_29] : memref<4x64x32xbf16, #tpu.memory_space<vmem>>, vector<1x64x32xbf16>
    %46 = vector.shape_cast %45 : vector<1x64x32xbf16> to vector<64x32xbf16>
    %47 = vector.extract_strided_slice %35 {offsets = [0, 9], sizes = [32, 71], strides = [1, 1]} : vector<32x81xbf16> to vector<32x71xbf16>
    %cst_30 = arith.constant dense<0.000000e+00> : vector<64x71xf32>
    %48 = tpu.matmul %46, %47, %cst_30 {dimension_numbers = #tpu.dot_dimension_numbers<[1], [0], [0], [1], [0, 0, 1, 1], [], []>} : vector<64x32xbf16>, vector<32x71xbf16>, vector<64x71xf32> -> vector<64x71xf32>
    %49 = arith.addf %44, %48 : vector<64x71xf32>
    %c3_31 = arith.constant 3 : index
    %c0_32 = arith.constant 0 : index
    %c0_33 = arith.constant 0 : index
    %50 = vector.load %arg4[%c3_31, %c0_32, %c0_33] : memref<4x64x32xbf16, #tpu.memory_space<vmem>>, vector<1x64x32xbf16>
    %51 = vector.shape_cast %50 : vector<1x64x32xbf16> to vector<64x32xbf16>
    %52 = vector.extract_strided_slice %35 {offsets = [0, 10], sizes = [32, 71], strides = [1, 1]} : vector<32x81xbf16> to vector<32x71xbf16>
    %cst_34 = arith.constant dense<0.000000e+00> : vector<64x71xf32>
    %53 = tpu.matmul %51, %52, %cst_34 {dimension_numbers = #tpu.dot_dimension_numbers<[1], [0], [0], [1], [0, 0, 1, 1], [], []>} : vector<64x32xbf16>, vector<32x71xbf16>, vector<64x71xf32> -> vector<64x71xf32>
    %54 = arith.addf %49, %53 : vector<64x71xf32>
    %c0_35 = arith.constant 0 : index
    %c0_36 = arith.constant 0 : index
    %55 = vector.load %arg5[%c0_35, %c0_36] : memref<64x1xf32, #tpu.memory_space<vmem>>, vector<64x1xf32>
    %56 = vector.broadcast %55 : vector<64x1xf32> to vector<64x71xf32>
    %57 = arith.addf %54, %56 : vector<64x71xf32>
    %cst_37 = arith.constant 0.000000e+00 : f32
    %58 = vector.broadcast %cst_37 : f32 to vector<64x71xf32>
    %59 = arith.maximumf %57, %58 : vector<64x71xf32>
    %60 = vector.extract_strided_slice %59 {offsets = [0, 0], sizes = [64, 61], strides = [1, 1]} : vector<64x71xf32> to vector<64x61xf32>
    %61 = vector.extract_strided_slice %59 {offsets = [0, 1], sizes = [64, 61], strides = [1, 1]} : vector<64x71xf32> to vector<64x61xf32>
    %62 = arith.maximumf %60, %61 : vector<64x61xf32>
    %63 = vector.extract_strided_slice %59 {offsets = [0, 9], sizes = [64, 61], strides = [1, 1]} : vector<64x71xf32> to vector<64x61xf32>
    %64 = vector.extract_strided_slice %59 {offsets = [0, 10], sizes = [64, 61], strides = [1, 1]} : vector<64x71xf32> to vector<64x61xf32>
    %65 = arith.maximumf %63, %64 : vector<64x61xf32>
    %66 = arith.maximumf %62, %65 : vector<64x61xf32>
    %cst_38 = arith.constant 0.000000e+00 : f32
    %67 = vector.broadcast %cst_38 : f32 to vector<4x2048xf32>
    %c0_39 = arith.constant 0 : index
    %c0_40 = arith.constant 0 : index
    %68 = vector.load %arg12[%c0_39, %c0_40] : memref<4x2048xf32, #tpu.memory_space<vmem>>, vector<4x2048xf32>
    tpu.vector_store %arg12[%c0_39, %c0_40], %67 {strides = array<i32>} : memref<4x2048xf32, #tpu.memory_space<vmem>>, vector<4x2048xf32>,
    %69 = vector.extract_strided_slice %66 {offsets = [0, 0], sizes = [4, 61], strides = [1, 1]} : vector<64x61xf32> to vector<4x61xf32>
    %c0_41 = arith.constant 0 : index
    %c0_42 = arith.constant 0 : index
    %70 = vector.load %arg12[%c0_41, %c0_42] : memref<4x2048xf32, #tpu.memory_space<vmem>>, vector<4x61xf32>
    tpu.vector_store %arg12[%c0_41, %c0_42], %69 {strides = array<i32>} : memref<4x2048xf32, #tpu.memory_space<vmem>>, vector<4x61xf32>,
    %71 = vector.extract_strided_slice %66 {offsets = [4, 0], sizes = [4, 61], strides = [1, 1]} : vector<64x61xf32> to vector<4x61xf32>
    %c0_43 = arith.constant 0 : index
    %c128 = arith.constant 128 : index
    %72 = vector.load %arg12[%c0_43, %c128] : memref<4x2048xf32, #tpu.memory_space<vmem>>, vector<4x61xf32>
    tpu.vector_store %arg12[%c0_43, %c128], %71 {strides = array<i32>} : memref<4x2048xf32, #tpu.memory_space<vmem>>, vector<4x61xf32>,
    %73 = vector.extract_strided_slice %66 {offsets = [8, 0], sizes = [4, 61], strides = [1, 1]} : vector<64x61xf32> to vector<4x61xf32>
    %c0_44 = arith.constant 0 : index
    %c256 = arith.constant 256 : index
    %74 = vector.load %arg12[%c0_44, %c256] : memref<4x2048xf32, #tpu.memory_space<vmem>>, vector<4x61xf32>
    tpu.vector_store %arg12[%c0_44, %c256], %73 {strides = array<i32>} : memref<4x2048xf32, #tpu.memory_space<vmem>>, vector<4x61xf32>,
    %75 = vector.extract_strided_slice %66 {offsets = [12, 0], sizes = [4, 61], strides = [1, 1]} : vector<64x61xf32> to vector<4x61xf32>
    %c0_45 = arith.constant 0 : index
    %c384 = arith.constant 384 : index
    %76 = vector.load %arg12[%c0_45, %c384] : memref<4x2048xf32, #tpu.memory_space<vmem>>, vector<4x61xf32>
    tpu.vector_store %arg12[%c0_45, %c384], %75 {strides = array<i32>} : memref<4x2048xf32, #tpu.memory_space<vmem>>, vector<4x61xf32>,
    %77 = vector.extract_strided_slice %66 {offsets = [16, 0], sizes = [4, 61], strides = [1, 1]} : vector<64x61xf32> to vector<4x61xf32>
    %c0_46 = arith.constant 0 : index
    %c512 = arith.constant 512 : index
    %78 = vector.load %arg12[%c0_46, %c512] : memref<4x2048xf32, #tpu.memory_space<vmem>>, vector<4x61xf32>
    tpu.vector_store %arg12[%c0_46, %c512], %77 {strides = array<i32>} : memref<4x2048xf32, #tpu.memory_space<vmem>>, vector<4x61xf32>,
    %79 = vector.extract_strided_slice %66 {offsets = [20, 0], sizes = [4, 61], strides = [1, 1]} : vector<64x61xf32> to vector<4x61xf32>
    %c0_47 = arith.constant 0 : index
    %c640 = arith.constant 640 : index
    %80 = vector.load %arg12[%c0_47, %c640] : memref<4x2048xf32, #tpu.memory_space<vmem>>, vector<4x61xf32>
    tpu.vector_store %arg12[%c0_47, %c640], %79 {strides = array<i32>} : memref<4x2048xf32, #tpu.memory_space<vmem>>, vector<4x61xf32>,
    %81 = vector.extract_strided_slice %66 {offsets = [24, 0], sizes = [4, 61], strides = [1, 1]} : vector<64x61xf32> to vector<4x61xf32>
    %c0_48 = arith.constant 0 : index
    %c768 = arith.constant 768 : index
    %82 = vector.load %arg12[%c0_48, %c768] : memref<4x2048xf32, #tpu.memory_space<vmem>>, vector<4x61xf32>
    tpu.vector_store %arg12[%c0_48, %c768], %81 {strides = array<i32>} : memref<4x2048xf32, #tpu.memory_space<vmem>>, vector<4x61xf32>,
    %83 = vector.extract_strided_slice %66 {offsets = [28, 0], sizes = [4, 61], strides = [1, 1]} : vector<64x61xf32> to vector<4x61xf32>
    %c0_49 = arith.constant 0 : index
    %c896 = arith.constant 896 : index
    %84 = vector.load %arg12[%c0_49, %c896] : memref<4x2048xf32, #tpu.memory_space<vmem>>, vector<4x61xf32>
    tpu.vector_store %arg12[%c0_49, %c896], %83 {strides = array<i32>} : memref<4x2048xf32, #tpu.memory_space<vmem>>, vector<4x61xf32>,
    %85 = vector.extract_strided_slice %66 {offsets = [32, 0], sizes = [4, 61], strides = [1, 1]} : vector<64x61xf32> to vector<4x61xf32>
    %c0_50 = arith.constant 0 : index
    %c1024 = arith.constant 1024 : index
    %86 = vector.load %arg12[%c0_50, %c1024] : memref<4x2048xf32, #tpu.memory_space<vmem>>, vector<4x61xf32>
    tpu.vector_store %arg12[%c0_50, %c1024], %85 {strides = array<i32>} : memref<4x2048xf32, #tpu.memory_space<vmem>>, vector<4x61xf32>,
    %87 = vector.extract_strided_slice %66 {offsets = [36, 0], sizes = [4, 61], strides = [1, 1]} : vector<64x61xf32> to vector<4x61xf32>
    %c0_51 = arith.constant 0 : index
    %c1152 = arith.constant 1152 : index
    %88 = vector.load %arg12[%c0_51, %c1152] : memref<4x2048xf32, #tpu.memory_space<vmem>>, vector<4x61xf32>
    tpu.vector_store %arg12[%c0_51, %c1152], %87 {strides = array<i32>} : memref<4x2048xf32, #tpu.memory_space<vmem>>, vector<4x61xf32>,
    %89 = vector.extract_strided_slice %66 {offsets = [40, 0], sizes = [4, 61], strides = [1, 1]} : vector<64x61xf32> to vector<4x61xf32>
    %c0_52 = arith.constant 0 : index
    %c1280 = arith.constant 1280 : index
    %90 = vector.load %arg12[%c0_52, %c1280] : memref<4x2048xf32, #tpu.memory_space<vmem>>, vector<4x61xf32>
    tpu.vector_store %arg12[%c0_52, %c1280], %89 {strides = array<i32>} : memref<4x2048xf32, #tpu.memory_space<vmem>>, vector<4x61xf32>,
    %91 = vector.extract_strided_slice %66 {offsets = [44, 0], sizes = [4, 61], strides = [1, 1]} : vector<64x61xf32> to vector<4x61xf32>
    %c0_53 = arith.constant 0 : index
    %c1408 = arith.constant 1408 : index
    %92 = vector.load %arg12[%c0_53, %c1408] : memref<4x2048xf32, #tpu.memory_space<vmem>>, vector<4x61xf32>
    tpu.vector_store %arg12[%c0_53, %c1408], %91 {strides = array<i32>} : memref<4x2048xf32, #tpu.memory_space<vmem>>, vector<4x61xf32>,
    %93 = vector.extract_strided_slice %66 {offsets = [48, 0], sizes = [4, 61], strides = [1, 1]} : vector<64x61xf32> to vector<4x61xf32>
    %c0_54 = arith.constant 0 : index
    %c1536 = arith.constant 1536 : index
    %94 = vector.load %arg12[%c0_54, %c1536] : memref<4x2048xf32, #tpu.memory_space<vmem>>, vector<4x61xf32>
    tpu.vector_store %arg12[%c0_54, %c1536], %93 {strides = array<i32>} : memref<4x2048xf32, #tpu.memory_space<vmem>>, vector<4x61xf32>,
    %95 = vector.extract_strided_slice %66 {offsets = [52, 0], sizes = [4, 61], strides = [1, 1]} : vector<64x61xf32> to vector<4x61xf32>
    %c0_55 = arith.constant 0 : index
    %c1664 = arith.constant 1664 : index
    %96 = vector.load %arg12[%c0_55, %c1664] : memref<4x2048xf32, #tpu.memory_space<vmem>>, vector<4x61xf32>
    tpu.vector_store %arg12[%c0_55, %c1664], %95 {strides = array<i32>} : memref<4x2048xf32, #tpu.memory_space<vmem>>, vector<4x61xf32>,
    %97 = vector.extract_strided_slice %66 {offsets = [56, 0], sizes = [4, 61], strides = [1, 1]} : vector<64x61xf32> to vector<4x61xf32>
    %c0_56 = arith.constant 0 : index
    %c1792 = arith.constant 1792 : index
    %98 = vector.load %arg12[%c0_56, %c1792] : memref<4x2048xf32, #tpu.memory_space<vmem>>, vector<4x61xf32>
    tpu.vector_store %arg12[%c0_56, %c1792], %97 {strides = array<i32>} : memref<4x2048xf32, #tpu.memory_space<vmem>>, vector<4x61xf32>,
    %99 = vector.extract_strided_slice %66 {offsets = [60, 0], sizes = [4, 61], strides = [1, 1]} : vector<64x61xf32> to vector<4x61xf32>
    %c0_57 = arith.constant 0 : index
    %c1920 = arith.constant 1920 : index
    %100 = vector.load %arg12[%c0_57, %c1920] : memref<4x2048xf32, #tpu.memory_space<vmem>>, vector<4x61xf32>
    tpu.vector_store %arg12[%c0_57, %c1920], %99 {strides = array<i32>} : memref<4x2048xf32, #tpu.memory_space<vmem>>, vector<4x61xf32>,
    %c0_58 = arith.constant 0 : index
    %c0_59 = arith.constant 0 : index
    %101 = vector.load %arg12[%c0_58, %c0_59] : memref<4x2048xf32, #tpu.memory_space<vmem>>, vector<4x2048xf32>
    %102 = arith.truncf %101 : vector<4x2048xf32> to vector<4x2048xbf16>
    %c0_60 = arith.constant 0 : index
    %c0_61 = arith.constant 0 : index
    %103 = vector.load %arg6[%c0_60, %c0_61] : memref<2048x128xbf16, #tpu.memory_space<vmem>>, vector<2048x128xbf16>
    %cst_62 = arith.constant dense<0.000000e+00> : vector<4x128xf32>
    %104 = tpu.matmul %102, %103, %cst_62 {dimension_numbers = #tpu.dot_dimension_numbers<[1], [0], [0], [1], [0, 0, 1, 1], [], []>} : vector<4x2048xbf16>, vector<2048x128xbf16>, vector<4x128xf32> -> vector<4x128xf32>
    %105 = vector.shape_cast %104 : vector<4x128xf32> to vector<2x2x128xf32>
    %c0_63 = arith.constant 0 : index
    %c0_64 = arith.constant 0 : index
    %c0_65 = arith.constant 0 : index
    %106 = vector.load %arg13[%c0_63, %c0_64, %c0_65] : memref<2x2x128xf32, #tpu.memory_space<vmem>>, vector<2x2x128xf32>
    tpu.vector_store %arg13[%c0_63, %c0_64, %c0_65], %105 {strides = array<i32>} : memref<2x2x128xf32, #tpu.memory_space<vmem>>, vector<2x2x128xf32>,
    %c0_66 = arith.constant 0 : index
    %c0_67 = arith.constant 0 : index
    %107 = vector.load %arg7[%c0_66, %c0_67] : memref<32x128xf32, #tpu.memory_space<vmem>>, vector<32x128xf32>
    %c0_68 = arith.constant 0 : index
    %c0_69 = arith.constant 0 : index
    %108 = vector.load %arg8[%c0_68, %c0_69] : memref<1x128xf32, #tpu.memory_space<vmem>>, vector<1x128xf32>
    %cst_70 = arith.constant 0.000000e+00 : f32
    %109 = vector.broadcast %cst_70 : f32 to vector<2x32xf32>
    %cst_71 = arith.constant 0.000000e+00 : f32
    %110 = vector.broadcast %cst_71 : f32 to vector<2x32xf32>
    %c0_i32 = arith.constant 0 : i32
    %111 = arith.index_cast %c0_i32 : i32 to index
    %c0_72 = arith.constant 0 : index
    %c0_73 = arith.constant 0 : index
    %112 = vector.load %arg13[%111, %c0_72, %c0_73] : memref<2x2x128xf32, #tpu.memory_space<vmem>>, vector<1x2x128xf32>
    %113 = vector.shape_cast %112 : vector<1x2x128xf32> to vector<2x128xf32>
    %cst_74 = arith.constant dense<0.000000e+00> : vector<2x128xf32>
    %114 = tpu.matmul %109, %107, %cst_74 {dimension_numbers = #tpu.dot_dimension_numbers<[1], [0], [0], [1], [0, 0, 1, 1], [], []>} : vector<2x32xf32>, vector<32x128xf32>, vector<2x128xf32> -> vector<2x128xf32>
    %115 = arith.addf %113, %114 : vector<2x128xf32>
    %116 = vector.broadcast %108 : vector<1x128xf32> to vector<2x128xf32>
    %117 = arith.addf %115, %116 : vector<2x128xf32>
    %cst_75 = arith.constant 0.000000e+00 : f32
    %118 = vector.broadcast %cst_75 : f32 to vector<2x128xf32>
    %119 = arith.subf %118, %117 : vector<2x128xf32>
    %120 = math.exp %119 : vector<2x128xf32>
    %cst_76 = arith.constant 1.000000e+00 : f32
    %121 = vector.broadcast %cst_76 : f32 to vector<2x128xf32>
    %122 = arith.addf %121, %120 : vector<2x128xf32>
    %123 = tpu.reciprocal %122 {approx = true} : vector<2x128xf32> -> vector<2x128xf32>
    %124 = math.tanh %117 : vector<2x128xf32>
    %125 = vector.extract_strided_slice %123 {offsets = [0, 0], sizes = [2, 32], strides = [1, 1]} : vector<2x128xf32> to vector<2x32xf32>
    %126 = vector.extract_strided_slice %123 {offsets = [0, 32], sizes = [2, 32], strides = [1, 1]} : vector<2x128xf32> to vector<2x32xf32>
    %127 = vector.extract_strided_slice %124 {offsets = [0, 64], sizes = [2, 32], strides = [1, 1]} : vector<2x128xf32> to vector<2x32xf32>
    %128 = vector.extract_strided_slice %123 {offsets = [0, 96], sizes = [2, 32], strides = [1, 1]} : vector<2x128xf32> to vector<2x32xf32>
    %129 = arith.mulf %126, %110 : vector<2x32xf32>
    %130 = arith.mulf %125, %127 : vector<2x32xf32>
    %131 = arith.addf %129, %130 : vector<2x32xf32>
    %132 = math.tanh %131 : vector<2x32xf32>
    %133 = arith.mulf %128, %132 : vector<2x32xf32>
    %c1_i32 = arith.constant 1 : i32
    %134 = arith.index_cast %c1_i32 : i32 to index
    %c0_77 = arith.constant 0 : index
    %c0_78 = arith.constant 0 : index
    %135 = vector.load %arg13[%134, %c0_77, %c0_78] : memref<2x2x128xf32, #tpu.memory_space<vmem>>, vector<1x2x128xf32>
    %136 = vector.shape_cast %135 : vector<1x2x128xf32> to vector<2x128xf32>
    %cst_79 = arith.constant dense<0.000000e+00> : vector<2x128xf32>
    %137 = tpu.matmul %133, %107, %cst_79 {dimension_numbers = #tpu.dot_dimension_numbers<[1], [0], [0], [1], [0, 0, 1, 1], [], []>} : vector<2x32xf32>, vector<32x128xf32>, vector<2x128xf32> -> vector<2x128xf32>
    %138 = arith.addf %136, %137 : vector<2x128xf32>
    %139 = vector.broadcast %108 : vector<1x128xf32> to vector<2x128xf32>
    %140 = arith.addf %138, %139 : vector<2x128xf32>
    %cst_80 = arith.constant 0.000000e+00 : f32
    %141 = vector.broadcast %cst_80 : f32 to vector<2x128xf32>
    %142 = arith.subf %141, %140 : vector<2x128xf32>
    %143 = math.exp %142 : vector<2x128xf32>
    %cst_81 = arith.constant 1.000000e+00 : f32
    %144 = vector.broadcast %cst_81 : f32 to vector<2x128xf32>
    %145 = arith.addf %144, %143 : vector<2x128xf32>
    %146 = tpu.reciprocal %145 {approx = true} : vector<2x128xf32> -> vector<2x128xf32>
    %147 = math.tanh %140 : vector<2x128xf32>
    %148 = vector.extract_strided_slice %146 {offsets = [0, 0], sizes = [2, 32], strides = [1, 1]} : vector<2x128xf32> to vector<2x32xf32>
    %149 = vector.extract_strided_slice %146 {offsets = [0, 32], sizes = [2, 32], strides = [1, 1]} : vector<2x128xf32> to vector<2x32xf32>
    %150 = vector.extract_strided_slice %147 {offsets = [0, 64], sizes = [2, 32], strides = [1, 1]} : vector<2x128xf32> to vector<2x32xf32>
    %151 = vector.extract_strided_slice %146 {offsets = [0, 96], sizes = [2, 32], strides = [1, 1]} : vector<2x128xf32> to vector<2x32xf32>
    %152 = arith.mulf %149, %131 : vector<2x32xf32>
    %153 = arith.mulf %148, %150 : vector<2x32xf32>
    %154 = arith.addf %152, %153 : vector<2x32xf32>
    %155 = math.tanh %154 : vector<2x32xf32>
    %156 = arith.mulf %151, %155 : vector<2x32xf32>
    %c2_i32 = arith.constant 2 : i32
    %c0_82 = arith.constant 0 : index
    %c0_83 = arith.constant 0 : index
    %157 = vector.load %arg9[%c0_82, %c0_83] : memref<32x128xf32, #tpu.memory_space<vmem>>, vector<32x128xf32>
    %cst_84 = arith.constant dense<0.000000e+00> : vector<2x128xf32>
    %158 = tpu.matmul %156, %157, %cst_84 {dimension_numbers = #tpu.dot_dimension_numbers<[1], [0], [0], [1], [0, 0, 1, 1], [], []>} : vector<2x32xf32>, vector<32x128xf32>, vector<2x128xf32> -> vector<2x128xf32>
    %c0_85 = arith.constant 0 : index
    %c0_86 = arith.constant 0 : index
    %159 = vector.load %arg10[%c0_85, %c0_86] : memref<1x128xf32, #tpu.memory_space<vmem>>, vector<1x128xf32>
    %160 = vector.broadcast %159 : vector<1x128xf32> to vector<2x128xf32>
    %161 = arith.addf %158, %160 : vector<2x128xf32>
    %c0_87 = arith.constant 0 : index
    %c0_88 = arith.constant 0 : index
    %162 = vector.load %arg11[%c0_87, %c0_88] : memref<2x128xf32, #tpu.memory_space<vmem>>, vector<2x128xf32>
    tpu.vector_store %arg11[%c0_87, %c0_88], %161 {strides = array<i32>} : memref<2x128xf32, #tpu.memory_space<vmem>>, vector<2x128xf32>,
    return
  }
}

</mosaic_0001>

<llo_original>
// kernel: squeeze.0
$region0: #{squeeze.0}
  %s0 = inlined_call_operand.vmem [shape: bf16[2,28,14], index: 0, kind: input, shape index: {}]
  %s1 = inlined_call_operand.vmem [shape: bf16[2,2,14,14], index: 1, kind: output, shape index: {}]
  $region1: #{squeeze.0} parent=0
    #allocation0 [shape = 'u8[114688]{0}', space=vmem, size = 0x1c000, scoped, tag = 'scoped mem for output reshape']
    #allocation1 [shape = 'u8[16384]{0}', space=vmem, size = 0x4000, scoped, tag = 'scoped mem for input reshape']
    %s3 = ssub.s32 256, 1
    %s4 = scalar_lea.vmem %s0, 12
    %s5 = sshrl.u32 %s3, 1
    %s6 = sor.u32 %s3, %s5
    %s7 = sand.u32 %s6, 85
    %s8 = sshrl.u32 %s7, 1
    %s9 = sor.u32 %s7, %s8
    %s10 = sand.u32 51, %s9
    %s11 = sshrl.u32 %s10, 2
    %s12 = sor.u32 %s10, %s11
    %s13 = sand.u32 15, %s12
    %v14 = vld [vmem:[%s4] sm:%s13]
    %v15 = vunpack.c.l.bf16 %v14
    %v16 = vunpack.c.h.bf16 %v14
    %s17 = scalar_lea.vmem [#allocation1], 24
    %18 = vst [vmem:[%s17] sm:%s3] %v15
    %s19 = scalar_lea.vmem %s0, 8
    %s20 = sshrl.u32 %s3, 1
    %s21 = sor.u32 %s3, %s20
    %s22 = sand.u32 %s21, 85
    %s23 = sshrl.u32 %s22, 1
    %s24 = sor.u32 %s22, %s23
    %s25 = sand.u32 51, %s24
    %s26 = sshrl.u32 %s25, 2
    %s27 = sor.u32 %s25, %s26
    %s28 = sand.u32 15, %s27
    %v29 = vld [vmem:[%s19] sm:%s28]
    %v30 = vunpack.c.l.bf16 %v29
    %v31 = vunpack.c.h.bf16 %v29
    %s32 = scalar_lea.vmem [#allocation1], 16
    %33 = vst [vmem:[%s32] sm:%s3] %v30
    %s34 = scalar_lea.vmem %s0, 4
    %s35 = sshrl.u32 %s3, 1
    %s36 = sor.u32 %s3, %s35
    %s37 = sand.u32 %s36, 85
    %s38 = sshrl.u32 %s37, 1
    %s39 = sor.u32 %s37, %s38
    %s40 = sand.u32 51, %s39
    %s41 = sshrl.u32 %s40, 2
    %s42 = sor.u32 %s40, %s41
    %s43 = sand.u32 15, %s42
    %v44 = vld [vmem:[%s34] sm:%s43]
    %v45 = vunpack.c.l.bf16 %v44
    %v46 = vunpack.c.h.bf16 %v44
    %s47 = scalar_lea.vmem [#allocation1], 8
    %48 = vst [vmem:[%s47] sm:%s3] %v45
    %s49 = sshrl.u32 %s3, 1
    %s50 = sor.u32 %s3, %s49
    %s51 = sand.u32 %s50, 85
    %s52 = sshrl.u32 %s51, 1
    %s53 = sor.u32 %s51, %s52
    %s54 = sand.u32 51, %s53
    %s55 = sshrl.u32 %s54, 2
    %s56 = sor.u32 %s54, %s55
    %s57 = sand.u32 15, %s56
    %v58 = vld [vmem:[%s0] sm:%s57]
    %v59 = vunpack.c.l.bf16 %v58
    %v60 = vunpack.c.h.bf16 %v58
    %61 = vst [vmem:[#allocation1] sm:%s3] %v59
    %v62 = vld [vmem:[#allocation1] sm:$0xff]
    %vm63 = vcmask 113664
    %64 = vst.msk [vmem:[#allocation0] ss:$8 sm:$0xf] %vm63, %v62
    %65 = vst.msk [vmem:[#allocation0] ss:$8 sm:$0xf0] %vm63, %v62
    %s66 = scalar_lea.vmem [#allocation1], 8
    %v67 = vld [vmem:[%s66] sm:$0x3f]
    %vm68 = vcmask 113664
    %s69 = scalar_lea.vmem [#allocation0], 64
    %70 = vst.msk [vmem:[%s69] ss:$8 sm:$0xf] %vm68, %v67
    %s71 = scalar_lea.vmem [#allocation0], 64
    %72 = vst.msk [vmem:[%s71] ss:$8 sm:$0x30] %vm68, %v67
    %s73 = scalar_lea.vmem [#allocation1], 16
    %v74 = vld [vmem:[%s73] sm:$0xff]
    %vm75 = vcmask 113664
    %s76 = scalar_lea.vmem [#allocation0], 112
    %77 = vst.msk [vmem:[%s76] ss:$8 sm:$0xf] %vm75, %v74
    %s78 = scalar_lea.vmem [#allocation0], 112
    %79 = vst.msk [vmem:[%s78] ss:$8 sm:$0xf0] %vm75, %v74
    %s80 = scalar_lea.vmem [#allocation1], 24
    %v81 = vld [vmem:[%s80] sm:$0x3f]
    %vm82 = vcmask 113664
    %s83 = scalar_lea.vmem [#allocation0], 176
    %84 = vst.msk [vmem:[%s83] ss:$8 sm:$0xf] %vm82, %v81
    %s85 = scalar_lea.vmem [#allocation0], 176
    %86 = vst.msk [vmem:[%s85] ss:$8 sm:$0x30] %vm82, %v81
    %v87 = vld [vmem:[#allocation1] sm:$0xff]
    %88 = vrot.lane.b32.xlu0 %v87, 114
    %v89 = vpop.permute.xlu0 %88
    %vm90 = vcmask 113664
    %s91 = scalar_lea.vmem [#allocation0], 1
    %92 = vst.msk [vmem:[%s91] ss:$8 sm:$0xf] %vm90, %v89
    %s93 = scalar_lea.vmem [#allocation0], 1
    %94 = vst.msk [vmem:[%s93] ss:$8 sm:$0xf0] %vm90, %v89
    %s95 = scalar_lea.vmem [#allocation1], 8
    %v96 = vld.sshfl [vmem:[%s95] sm:$0xff pattern:$0x98543210]
    %97 = vrot.lane.b32.xlu0 %v96, 114
    %v98 = vpop.permute.xlu0 %97
    %vm99 = vcmask 113664
    %s100 = scalar_lea.vmem [#allocation0], 65
    %101 = vst.msk [vmem:[%s100] ss:$8 sm:$0xf] %vm99, %v98
    %s102 = scalar_lea.vmem [#allocation0], 65
    %103 = vst.msk [vmem:[%s102] ss:$8 sm:$0xf0] %vm99, %v98
    %s104 = scalar_lea.vmem [#allocation1], 18
    %v105 = vld [vmem:[%s104] sm:$0xff]
    %106 = vrot.lane.b32.xlu0 %v105, 114
    %v107 = vpop.permute.xlu0 %106
    %vm108 = vcmask 113664
    %s109 = scalar_lea.vmem [#allocation0], 129
    %110 = vst.msk [vmem:[%s109] ss:$8 sm:$0xf] %vm108, %v107
    %s111 = scalar_lea.vmem [#allocation0], 129
    %112 = vst.msk [vmem:[%s111] ss:$8 sm:$0xf0] %vm108, %v107
    %s113 = scalar_lea.vmem [#allocation1], 26
    %v114 = vld [vmem:[%s113] sm:$0xf]
    %115 = vrot.lane.b32.xlu0 %v114, 114
    %v116 = vpop.permute.xlu0 %115
    %vm117 = vcmask 113664
    %s118 = scalar_lea.vmem [#allocation0], 193
    %119 = vst.msk [vmem:[%s118] ss:$8 sm:$0xf] %vm117, %v116
    %s121 = ssub.s32 4, 1
    %v122 = vld [vmem:[#allocation0] sm:%s121]
    %v123 = vpack.c.bf16 0.0, %v122
    %s125 = ssub.s32 2, 1
    %126 = vst [vmem:[%s1] sm:%s125] %v123
    %s127 = scalar_lea.vmem [#allocation0], 8
    %v128 = vld [vmem:[%s127] sm:%s121]
    %v129 = vpack.c.bf16 0.0, %v128
    %s131 = ssub.s32 2, 1
    %s132 = scalar_lea.vmem %s1, 1
    %133 = vst [vmem:[%s132] sm:%s131] %v129
    %s134 = scalar_lea.vmem [#allocation0], 16
    %v135 = vld [vmem:[%s134] sm:%s121]
    %v136 = vpack.c.bf16 0.0, %v135
    %s138 = ssub.s32 2, 1
    %s139 = scalar_lea.vmem %s1, 2
    %140 = vst [vmem:[%s139] sm:%s138] %v136
    %s141 = scalar_lea.vmem [#allocation0], 24
    %v142 = vld [vmem:[%s141] sm:%s121]
    %v143 = vpack.c.bf16 0.0, %v142
    %s145 = ssub.s32 2, 1
    %s146 = scalar_lea.vmem %s1, 3
    %147 = vst [vmem:[%s146] sm:%s145] %v143
    %s148 = scalar_lea.vmem [#allocation0], 32
    %v149 = vld [vmem:[%s148] sm:%s121]
    %v150 = vpack.c.bf16 0.0, %v149
    %s152 = ssub.s32 2, 1
    %s153 = scalar_lea.vmem %s1, 4
    %154 = vst [vmem:[%s153] sm:%s152] %v150
    %s155 = scalar_lea.vmem [#allocation0], 40
    %v156 = vld [vmem:[%s155] sm:%s121]
    %v157 = vpack.c.bf16 0.0, %v156
    %s159 = ssub.s32 2, 1
    %s160 = scalar_lea.vmem %s1, 5
    %161 = vst [vmem:[%s160] sm:%s159] %v157
    %s162 = scalar_lea.vmem [#allocation0], 48
    %v163 = vld [vmem:[%s162] sm:%s121]
    %v164 = vpack.c.bf16 0.0, %v163
    %s166 = ssub.s32 2, 1
    %s167 = scalar_lea.vmem %s1, 6
    %168 = vst [vmem:[%s167] sm:%s166] %v164
    %s169 = scalar_lea.vmem [#allocation0], 56
    %v170 = vld [vmem:[%s169] sm:%s121]
    %v171 = vpack.c.bf16 0.0, %v170
    %s173 = ssub.s32 2, 1
    %s174 = scalar_lea.vmem %s1, 7
    %175 = vst [vmem:[%s174] sm:%s173] %v171
    %s176 = scalar_lea.vmem [#allocation0], 64
    %v177 = vld [vmem:[%s176] sm:%s121]
    %v178 = vpack.c.bf16 0.0, %v177
    %s180 = ssub.s32 2, 1
    %s181 = scalar_lea.vmem %s1, 8
    %182 = vst [vmem:[%s181] sm:%s180] %v178
    %s183 = scalar_lea.vmem [#allocation0], 72
    %v184 = vld [vmem:[%s183] sm:%s121]
    %v185 = vpack.c.bf16 0.0, %v184
    %s187 = ssub.s32 2, 1
    %s188 = scalar_lea.vmem %s1, 9
    %189 = vst [vmem:[%s188] sm:%s187] %v185
    %s190 = scalar_lea.vmem [#allocation0], 80
    %v191 = vld [vmem:[%s190] sm:%s121]
    %v192 = vpack.c.bf16 0.0, %v191
    %s194 = ssub.s32 2, 1
    %s195 = scalar_lea.vmem %s1, 10
    %196 = vst [vmem:[%s195] sm:%s194] %v192
    %s197 = scalar_lea.vmem [#allocation0], 88
    %v198 = vld [vmem:[%s197] sm:%s121]
    %v199 = vpack.c.bf16 0.0, %v198
    %s201 = ssub.s32 2, 1
    %s202 = scalar_lea.vmem %s1, 11
    %203 = vst [vmem:[%s202] sm:%s201] %v199
    %s204 = scalar_lea.vmem [#allocation0], 96
    %v205 = vld [vmem:[%s204] sm:%s121]
    %v206 = vpack.c.bf16 0.0, %v205
    %s208 = ssub.s32 2, 1
    %s209 = scalar_lea.vmem %s1, 12
    %210 = vst [vmem:[%s209] sm:%s208] %v206
    %s211 = scalar_lea.vmem [#allocation0], 104
    %v212 = vld [vmem:[%s211] sm:%s121]
    %v213 = vpack.c.bf16 0.0, %v212
    %s215 = ssub.s32 2, 1
    %s216 = scalar_lea.vmem %s1, 13
    %217 = vst [vmem:[%s216] sm:%s215] %v213
    %s218 = scalar_lea.vmem [#allocation0], 112
    %v219 = vld [vmem:[%s218] sm:%s121]
    %v220 = vpack.c.bf16 0.0, %v219
    %s222 = ssub.s32 2, 1
    %s223 = scalar_lea.vmem %s1, 14
    %224 = vst [vmem:[%s223] sm:%s222] %v220
    %s225 = scalar_lea.vmem [#allocation0], 120
    %v226 = vld [vmem:[%s225] sm:%s121]
    %v227 = vpack.c.bf16 0.0, %v226
    %s229 = ssub.s32 2, 1
    %s230 = scalar_lea.vmem %s1, 15
    %231 = vst [vmem:[%s230] sm:%s229] %v227
    %s232 = scalar_lea.vmem [#allocation0], 128
    %v233 = vld [vmem:[%s232] sm:%s121]
    %v234 = vpack.c.bf16 0.0, %v233
    %s236 = ssub.s32 2, 1
    %s237 = scalar_lea.vmem %s1, 16
    %238 = vst [vmem:[%s237] sm:%s236] %v234
    %s239 = scalar_lea.vmem [#allocation0], 136
    %v240 = vld [vmem:[%s239] sm:%s121]
    %v241 = vpack.c.bf16 0.0, %v240
    %s243 = ssub.s32 2, 1
    %s244 = scalar_lea.vmem %s1, 17
    %245 = vst [vmem:[%s244] sm:%s243] %v241
    %s246 = scalar_lea.vmem [#allocation0], 144
    %v247 = vld [vmem:[%s246] sm:%s121]
    %v248 = vpack.c.bf16 0.0, %v247
    %s250 = ssub.s32 2, 1
    %s251 = scalar_lea.vmem %s1, 18
    %252 = vst [vmem:[%s251] sm:%s250] %v248
    %s253 = scalar_lea.vmem [#allocation0], 152
    %v254 = vld [vmem:[%s253] sm:%s121]
    %v255 = vpack.c.bf16 0.0, %v254
    %s257 = ssub.s32 2, 1
    %s258 = scalar_lea.vmem %s1, 19
    %259 = vst [vmem:[%s258] sm:%s257] %v255
    %s260 = scalar_lea.vmem [#allocation0], 160
    %v261 = vld [vmem:[%s260] sm:%s121]
    %v262 = vpack.c.bf16 0.0, %v261
    %s264 = ssub.s32 2, 1
    %s265 = scalar_lea.vmem %s1, 20
    %266 = vst [vmem:[%s265] sm:%s264] %v262
    %s267 = scalar_lea.vmem [#allocation0], 168
    %v268 = vld [vmem:[%s267] sm:%s121]
    %v269 = vpack.c.bf16 0.0, %v268
    %s271 = ssub.s32 2, 1
    %s272 = scalar_lea.vmem %s1, 21
    %273 = vst [vmem:[%s272] sm:%s271] %v269
    %s274 = scalar_lea.vmem [#allocation0], 176
    %v275 = vld [vmem:[%s274] sm:%s121]
    %v276 = vpack.c.bf16 0.0, %v275
    %s278 = ssub.s32 2, 1
    %s279 = scalar_lea.vmem %s1, 22
    %280 = vst [vmem:[%s279] sm:%s278] %v276
    %s281 = scalar_lea.vmem [#allocation0], 184
    %v282 = vld [vmem:[%s281] sm:%s121]
    %v283 = vpack.c.bf16 0.0, %v282
    %s285 = ssub.s32 2, 1
    %s286 = scalar_lea.vmem %s1, 23
    %287 = vst [vmem:[%s286] sm:%s285] %v283
    %s288 = scalar_lea.vmem [#allocation0], 192
    %v289 = vld [vmem:[%s288] sm:%s121]
    %v290 = vpack.c.bf16 0.0, %v289
    %s292 = ssub.s32 2, 1
    %s293 = scalar_lea.vmem %s1, 24
    %294 = vst [vmem:[%s293] sm:%s292] %v290
    %s295 = scalar_lea.vmem [#allocation0], 200
    %v296 = vld [vmem:[%s295] sm:%s121]
    %v297 = vpack.c.bf16 0.0, %v296
    %s299 = ssub.s32 2, 1
    %s300 = scalar_lea.vmem %s1, 25
    %301 = vst [vmem:[%s300] sm:%s299] %v297
    %s302 = scalar_lea.vmem [#allocation0], 208
    %v303 = vld [vmem:[%s302] sm:%s121]
    %v304 = vpack.c.bf16 0.0, %v303
    %s306 = ssub.s32 2, 1
    %s307 = scalar_lea.vmem %s1, 26
    %308 = vst [vmem:[%s307] sm:%s306] %v304
    %s309 = scalar_lea.vmem [#allocation0], 216
    %v310 = vld [vmem:[%s309] sm:%s121]
    %v311 = vpack.c.bf16 0.0, %v310
    %s313 = ssub.s32 2, 1
    %s314 = scalar_lea.vmem %s1, 27
    %315 = vst [vmem:[%s314] sm:%s313] %v311

// kernel: vip_features_forward.1
$region0: #{vip_features_forward.1}
  #allocation0 [shape = 'u32[]', space=smem, size = 0x4, offset = 0x4, fixed_abs, tag = 'smem constant byte address 0x4 - core index']
  #allocation1 [shape = 'u32[72,128]{1,0:T(1,128)}', space=vmem, size = 0x9000, scoped, tag = 'internal scratch']
  #allocation2 [shape = 'f32[4,2048]{1,0:T(4,128)}', space=vmem, size = 0x8000, scoped, tag = 'scratch operand']
  #allocation3 [shape = 'f32[2,2,128]{2,1,0:T(2,128)}', space=vmem, size = 0x800, scoped, tag = 'scratch operand']
  %s0 = inlined_call_operand.vmem [shape: bf16[4,256], index: 0, kind: input, shape index: {}]
  %s1 = inlined_call_operand.vmem [shape: bf16[4,32,4], index: 1, kind: input, shape index: {}]
  %s2 = inlined_call_operand.vmem [shape: f32[32,1], index: 2, kind: input, shape index: {}]
  %s3 = inlined_call_operand.vmem [shape: bf16[205,81], index: 3, kind: input, shape index: {}]
  %s4 = inlined_call_operand.vmem [shape: bf16[4,64,32], index: 4, kind: input, shape index: {}]
  %s5 = inlined_call_operand.vmem [shape: f32[64,1], index: 5, kind: input, shape index: {}]
  %s6 = inlined_call_operand.vmem [shape: bf16[2048,128], index: 6, kind: input, shape index: {}]
  %s7 = inlined_call_operand.vmem [shape: f32[32,128], index: 7, kind: input, shape index: {}]
  %s8 = inlined_call_operand.vmem [shape: f32[1,128], index: 8, kind: input, shape index: {}]
  %s9 = inlined_call_operand.vmem [shape: f32[32,128], index: 9, kind: input, shape index: {}]
  %s10 = inlined_call_operand.vmem [shape: f32[1,128], index: 10, kind: input, shape index: {}]
  %s11 = inlined_call_operand.hbm [shape: f32[2,128], index: 11, kind: output, shape index: {}]
  %s12 = sld [smem:[#allocation0]]
  $region54: #{vip_features_forward.1} parent=0
    _
  %s14 = ssub.s32 1, %s12
  %s15 = scalar_select 0, %s14, %s12
  $region1: #{vip_features_forward.1} parent=0
    #allocation4 [shape = 'u8[1024]{0}', space=vmem, size = 0x400, scoped, tag = 'output window, operand 0, single buffered']
    #allocation5 [shape = 's32[1]{0}', space=sflag, size = 0x4, scoped, tag = 'scoped memory for vip_features_forward.1']
    %16 = vsyncpa [#allocation5], 0
    // Predicated region
    $region2: #{vip_features_forward.1} parent=1 // pred_check
      _
    $region3: #{vip_features_forward.1} parent=1 // pred_check_branch
      %18 = sbr.rel (0) target = $region5
    $region4: #{vip_features_forward.1} parent=1 // pred_region
      _
    $region5: #{vip_features_forward.1} parent=1 // pred_fallthru
      _
    // Predicated region
    $region6: #{vip_features_forward.1} parent=1 // pred_check
      _
    $region7: #{vip_features_forward.1} parent=1 // pred_check_branch
      %20 = sbr.rel (0) target = $region9
    $region8: #{vip_features_forward.1} parent=1 // pred_region
      _
    $region9: #{vip_features_forward.1} parent=1 // pred_fallthru
      _
    // Predicated region
    $region10: #{vip_features_forward.1} parent=1 // pred_check
      _
    $region11: #{vip_features_forward.1} parent=1 // pred_check_branch
      %22 = sbr.rel (0) target = $region13
    $region12: #{vip_features_forward.1} parent=1 // pred_region
      _
    $region13: #{vip_features_forward.1} parent=1 // pred_fallthru
      _
    // Predicated region
    $region14: #{vip_features_forward.1} parent=1 // pred_check
      _
    $region15: #{vip_features_forward.1} parent=1 // pred_check_branch
      %24 = sbr.rel (0) target = $region17
    $region16: #{vip_features_forward.1} parent=1 // pred_region
      _
    $region17: #{vip_features_forward.1} parent=1 // pred_fallthru
      _
    // Predicated region
    $region18: #{vip_features_forward.1} parent=1 // pred_check
      _
    $region19: #{vip_features_forward.1} parent=1 // pred_check_branch
      %26 = sbr.rel (0) target = $region21
    $region20: #{vip_features_forward.1} parent=1 // pred_region
      _
    $region21: #{vip_features_forward.1} parent=1 // pred_fallthru
      _
    // Predicated region
    $region22: #{vip_features_forward.1} parent=1 // pred_check
      _
    $region23: #{vip_features_forward.1} parent=1 // pred_check_branch
      %28 = sbr.rel (0) target = $region25
    $region24: #{vip_features_forward.1} parent=1 // pred_region
      _
    $region25: #{vip_features_forward.1} parent=1 // pred_fallthru
      _
    // Predicated region
    $region26: #{vip_features_forward.1} parent=1 // pred_check
      _
    $region27: #{vip_features_forward.1} parent=1 // pred_check_branch
      %30 = sbr.rel (0) target = $region29
    $region28: #{vip_features_forward.1} parent=1 // pred_region
      _
    $region29: #{vip_features_forward.1} parent=1 // pred_fallthru
      _
    // Predicated region
    $region30: #{vip_features_forward.1} parent=1 // pred_check
      _
    $region31: #{vip_features_forward.1} parent=1 // pred_check_branch
      %32 = sbr.rel (0) target = $region33
    $region32: #{vip_features_forward.1} parent=1 // pred_region
      _
    $region33: #{vip_features_forward.1} parent=1 // pred_fallthru
      _
    // Predicated region
    $region34: #{vip_features_forward.1} parent=1 // pred_check
      _
    $region35: #{vip_features_forward.1} parent=1 // pred_check_branch
      %34 = sbr.rel (0) target = $region37
    $region36: #{vip_features_forward.1} parent=1 // pred_region
      _
    $region37: #{vip_features_forward.1} parent=1 // pred_fallthru
      _
    // Predicated region
    $region38: #{vip_features_forward.1} parent=1 // pred_check
      _
    $region39: #{vip_features_forward.1} parent=1 // pred_check_branch
      %36 = sbr.rel (0) target = $region41
    $region40: #{vip_features_forward.1} parent=1 // pred_region
      _
    $region41: #{vip_features_forward.1} parent=1 // pred_fallthru
      _
    // Predicated region
    $region42: #{vip_features_forward.1} parent=1 // pred_check
      _
    $region43: #{vip_features_forward.1} parent=1 // pred_check_branch
      %38 = sbr.rel (0) target = $region45
    $region44: #{vip_features_forward.1} parent=1 // pred_region
      _
    $region45: #{vip_features_forward.1} parent=1 // pred_fallthru
      _
    %v40 = vld [vmem:[%s0] sm:$0xf]
    %v41 = vld [vmem:[%s1] sm:$0xf]
    %v42 = vld [vmem:[%s1 + $0x4] sm:$0xf]
    %v43 = vld [vmem:[%s1 + $0x8] sm:$0xf]
    %v44 = vld [vmem:[%s1 + $0xc] sm:$0xf]
    %s45 = scalar_lea.vmem %s1, 16
    %v46 = vld [vmem:[%s45] sm:$0xf]
    %v47 = vld [vmem:[%s45 + $0x4] sm:$0xf]
    %v48 = vld [vmem:[%s45 + $0x8] sm:$0xf]
    %v49 = vld [vmem:[%s45 + $0xc] sm:$0xf]
    %v54 = vunpack.c.l.b16 %v46
    %v55 = vunpack.c.l.b16 %v47
    %v56 = vunpack.c.l.b16 %v48
    %v57 = vunpack.c.l.b16 %v49
    %v58 = vpack.c.b16 %v55, %v54
    %v59 = vpack.c.b16 %v57, %v56
    %61 = vst [vmem:[#allocation1] ss:$4 sm:$0xff] %v40
    %v62 = vld.sshfl [vmem:[#allocation1] sm:$0xff pattern:$0x73625140]
    %v64 = vld.sshfl [vmem:[#allocation1 + $0x8] sm:$0xff pattern:$0x73625140]
    %66 = vrot.lane.b32.xlu0 %v62, 127
    %v67 = vpop.permute.xlu0 %66
    %68 = vrot.lane.b32.xlu0 %v64, 127
    %v69 = vpop.permute.xlu0 %68
    %vm70 = vcmask 1039360
    %v71 = vsel %vm70, %v67, %v69
    %vm72 = vcmask 31744
    %v74 = vsel %vm72, %v58, 0
    %v77 = vsel %vm72, %v59, 0
    %vm79 = vcmask 1041408
    %v81 = vsel %vm79, %v71, 0
    %v84 = vsel %vm79, %v69, 0
    %86 = vmatpush.bf16.msra.mxu0 0
    %87 = vmatpush.bf16.msra.mxu0 0
    %88 = vmatpush.bf16.msra.mxu0 0
    %89 = vmatpush.bf16.msra.mxu0 0
    %90 = vmatpush.bf16.msra.mxu0 0
    %91 = vmatpush.bf16.msra.mxu0 0
    %92 = vmatpush.bf16.msra.mxu0 0
    %93 = vmatpush.bf16.msra.mxu0 %v81
    %94 = vmatmul.bf16.gmra.mxu0 %v74
    %v95 = vpop.f32.mrf.mxu0
    %v96 = vadd.f32 0.0, %v95
    %v97 = vpop.f32.mrf.mxu0
    %v98 = vadd.f32 0.0, %v97
    %99 = vmatmul.bf16.gmra.mxu0 %v77
    %v100 = vpop.f32.mrf.mxu0
    %v101 = vadd.f32 0.0, %v100
    %v102 = vpop.f32.mrf.mxu0
    %v103 = vadd.f32 0.0, %v102
    %104 = vdwg.mxu0
    %105 = vmatpush.bf16.msra.mxu0 0
    %106 = vmatpush.bf16.msra.mxu0 0
    %107 = vmatpush.bf16.msra.mxu0 0
    %108 = vmatpush.bf16.msra.mxu0 0
    %109 = vmatpush.bf16.msra.mxu0 0
    %110 = vmatpush.bf16.msra.mxu0 0
    %111 = vmatpush.bf16.msra.mxu0 0
    %112 = vmatpush.bf16.msra.mxu0 %v84
    %113 = vmatmul.bf16.gmra.mxu0 %v74
    %v114 = vpop.f32.mrf.mxu0
    %v115 = vadd.f32 0.0, %v114
    %v116 = vpop.f32.mrf.mxu0
    %v117 = vadd.f32 0.0, %v116
    %118 = vmatmul.bf16.gmra.mxu0 %v77
    %v119 = vpop.f32.mrf.mxu0
    %v120 = vadd.f32 0.0, %v119
    %v121 = vpop.f32.mrf.mxu0
    %v122 = vadd.f32 0.0, %v121
    %123 = vdwg.mxu0
    %v128 = vunpack.c.l.b16 %v41
    %v129 = vunpack.c.l.b16 %v42
    %v130 = vunpack.c.l.b16 %v43
    %v131 = vunpack.c.l.b16 %v44
    %v132 = vpack.c.b16 %v129, %v128
    %v133 = vpack.c.b16 %v131, %v130
    %134 = vst [vmem:[#allocation1] ss:$4 sm:$0xff] %v40
    %v135 = vld.sshfl [vmem:[#allocation1] sm:$0xff pattern:$0x73625140]
    %v136 = vld.sshfl [vmem:[#allocation1 + $0x8] sm:$0xff pattern:$0x73625140]
    %v138 = vsel %vm72, %v132, 0
    %v141 = vsel %vm72, %v133, 0
    %v143 = vsel %vm79, %v135, 0
    %v145 = vsel %vm79, %v136, 0
    %147 = vmatpush.bf16.msra.mxu0 0
    %148 = vmatpush.bf16.msra.mxu0 0
    %149 = vmatpush.bf16.msra.mxu0 0
    %150 = vmatpush.bf16.msra.mxu0 0
    %151 = vmatpush.bf16.msra.mxu0 0
    %152 = vmatpush.bf16.msra.mxu0 0
    %153 = vmatpush.bf16.msra.mxu0 0
    %154 = vmatpush.bf16.msra.mxu0 %v143
    %155 = vmatmul.bf16.gmra.mxu0 %v138
    %v156 = vpop.f32.mrf.mxu0
    %v157 = vadd.f32 %v96, %v156
    %v158 = vpop.f32.mrf.mxu0
    %v159 = vadd.f32 %v98, %v158
    %160 = vmatmul.bf16.gmra.mxu0 %v141
    %v161 = vpop.f32.mrf.mxu0
    %v162 = vadd.f32 %v101, %v161
    %v163 = vpop.f32.mrf.mxu0
    %v164 = vadd.f32 %v103, %v163
    %165 = vdwg.mxu0
    %166 = vmatpush.bf16.msra.mxu0 0
    %167 = vmatpush.bf16.msra.mxu0 0
    %168 = vmatpush.bf16.msra.mxu0 0
    %169 = vmatpush.bf16.msra.mxu0 0
    %170 = vmatpush.bf16.msra.mxu0 0
    %171 = vmatpush.bf16.msra.mxu0 0
    %172 = vmatpush.bf16.msra.mxu0 0
    %173 = vmatpush.bf16.msra.mxu0 %v145
    %174 = vmatmul.bf16.gmra.mxu0 %v138
    %v175 = vpop.f32.mrf.mxu0
    %v176 = vadd.f32 %v115, %v175
    %v177 = vpop.f32.mrf.mxu0
    %v178 = vadd.f32 %v117, %v177
    %179 = vmatmul.bf16.gmra.mxu0 %v141
    %v180 = vpop.f32.mrf.mxu0
    %v181 = vadd.f32 %v120, %v180
    %v182 = vpop.f32.mrf.mxu0
    %v183 = vadd.f32 %v122, %v182
    %184 = vdwg.mxu0
    %s185 = scalar_lea.vmem %s1, 32
    %v186 = vld [vmem:[%s185] sm:$0xf]
    %v187 = vld [vmem:[%s185 + $0x4] sm:$0xf]
    %v188 = vld [vmem:[%s185 + $0x8] sm:$0xf]
    %v189 = vld [vmem:[%s185 + $0xc] sm:$0xf]
    %v194 = vunpack.c.l.b16 %v186
    %v195 = vunpack.c.l.b16 %v187
    %v196 = vunpack.c.l.b16 %v188
    %v197 = vunpack.c.l.b16 %v189
    %v198 = vpack.c.b16 %v195, %v194
    %v199 = vpack.c.b16 %v197, %v196
    %200 = vst [vmem:[#allocation1] ss:$4 sm:$0xff] %v40
    %v201 = vld.sshfl [vmem:[#allocation1] sm:$0xff pattern:$0x73625140]
    %v203 = vld.sshfl [vmem:[#allocation1 + $0x8] sm:$0xff pattern:$0x73625140]
    %205 = vrot.lane.b32.xlu0 %v201, 112
    %v206 = vpop.permute.xlu0 %205
    %207 = vrot.lane.b32.xlu0 %v203, 112
    %v208 = vpop.permute.xlu0 %207
    %vm209 = vcmask 916480
    %v210 = vsel %vm209, %v206, %v208
    %v212 = vsel %vm72, %v198, 0
    %v215 = vsel %vm72, %v199, 0
    %v218 = vsel %vm79, %v210, 0
    %v221 = vsel %vm79, %v208, 0
    %223 = vmatpush.bf16.msra.mxu0 0
    %224 = vmatpush.bf16.msra.mxu0 0
    %225 = vmatpush.bf16.msra.mxu0 0
    %226 = vmatpush.bf16.msra.mxu0 0
    %227 = vmatpush.bf16.msra.mxu0 0
    %228 = vmatpush.bf16.msra.mxu0 0
    %229 = vmatpush.bf16.msra.mxu0 0
    %230 = vmatpush.bf16.msra.mxu0 %v218
    %231 = vmatmul.bf16.gmra.mxu0 %v212
    %v232 = vpop.f32.mrf.mxu0
    %v233 = vadd.f32 0.0, %v232
    %v234 = vpop.f32.mrf.mxu0
    %v235 = vadd.f32 0.0, %v234
    %236 = vmatmul.bf16.gmra.mxu0 %v215
    %v237 = vpop.f32.mrf.mxu0
    %v238 = vadd.f32 0.0, %v237
    %v239 = vpop.f32.mrf.mxu0
    %v240 = vadd.f32 0.0, %v239
    %241 = vdwg.mxu0
    %242 = vmatpush.bf16.msra.mxu0 0
    %243 = vmatpush.bf16.msra.mxu0 0
    %244 = vmatpush.bf16.msra.mxu0 0
    %245 = vmatpush.bf16.msra.mxu0 0
    %246 = vmatpush.bf16.msra.mxu0 0
    %247 = vmatpush.bf16.msra.mxu0 0
    %248 = vmatpush.bf16.msra.mxu0 0
    %249 = vmatpush.bf16.msra.mxu0 %v221
    %250 = vmatmul.bf16.gmra.mxu0 %v212
    %v251 = vpop.f32.mrf.mxu0
    %v252 = vadd.f32 0.0, %v251
    %v253 = vpop.f32.mrf.mxu0
    %v254 = vadd.f32 0.0, %v253
    %255 = vmatmul.bf16.gmra.mxu0 %v215
    %v256 = vpop.f32.mrf.mxu0
    %v257 = vadd.f32 0.0, %v256
    %v258 = vpop.f32.mrf.mxu0
    %v259 = vadd.f32 0.0, %v258
    %260 = vdwg.mxu0
    %v261 = vadd.f32 %v157, %v233
    %v262 = vadd.f32 %v176, %v252
    %v263 = vadd.f32 %v159, %v235
    %v264 = vadd.f32 %v178, %v254
    %v265 = vadd.f32 %v162, %v238
    %v266 = vadd.f32 %v181, %v257
    %v267 = vadd.f32 %v164, %v240
    %v268 = vadd.f32 %v183, %v259
    %s269 = scalar_lea.vmem %s1, 48
    %v270 = vld [vmem:[%s269] sm:$0xf]
    %v271 = vld [vmem:[%s269 + $0x4] sm:$0xf]
    %v272 = vld [vmem:[%s269 + $0x8] sm:$0xf]
    %v273 = vld [vmem:[%s269 + $0xc] sm:$0xf]
    %v278 = vunpack.c.l.b16 %v270
    %v279 = vunpack.c.l.b16 %v271
    %v280 = vunpack.c.l.b16 %v272
    %v281 = vunpack.c.l.b16 %v273
    %v282 = vpack.c.b16 %v279, %v278
    %v283 = vpack.c.b16 %v281, %v280
    %284 = vst [vmem:[#allocation1] ss:$4 sm:$0xff] %v40
    %v285 = vld.sshfl [vmem:[#allocation1] sm:$0xff pattern:$0x73625140]
    %v287 = vld.sshfl [vmem:[#allocation1 + $0x8] sm:$0xff pattern:$0x73625140]
    %289 = vrot.lane.b32.xlu0 %v285, 111
    %v290 = vpop.permute.xlu0 %289
    %291 = vrot.lane.b32.xlu0 %v287, 111
    %v292 = vpop.permute.xlu0 %291
    %vm293 = vcmask 908288
    %v294 = vsel %vm293, %v290, %v292
    %v296 = vsel %vm72, %v282, 0
    %v299 = vsel %vm72, %v283, 0
    %v302 = vsel %vm79, %v294, 0
    %v305 = vsel %vm79, %v292, 0
    %307 = vmatpush.bf16.msra.mxu0 0
    %308 = vmatpush.bf16.msra.mxu0 0
    %309 = vmatpush.bf16.msra.mxu0 0
    %310 = vmatpush.bf16.msra.mxu0 0
    %311 = vmatpush.bf16.msra.mxu0 0
    %312 = vmatpush.bf16.msra.mxu0 0
    %313 = vmatpush.bf16.msra.mxu0 0
    %314 = vmatpush.bf16.msra.mxu0 %v302
    %315 = vmatmul.bf16.gmra.mxu0 %v296
    %v316 = vpop.f32.mrf.mxu0
    %v317 = vadd.f32 0.0, %v316
    %v318 = vpop.f32.mrf.mxu0
    %v319 = vadd.f32 0.0, %v318
    %320 = vmatmul.bf16.gmra.mxu0 %v299
    %v321 = vpop.f32.mrf.mxu0
    %v322 = vadd.f32 0.0, %v321
    %v323 = vpop.f32.mrf.mxu0
    %v324 = vadd.f32 0.0, %v323
    %325 = vdwg.mxu0
    %326 = vmatpush.bf16.msra.mxu0 0
    %327 = vmatpush.bf16.msra.mxu0 0
    %328 = vmatpush.bf16.msra.mxu0 0
    %329 = vmatpush.bf16.msra.mxu0 0
    %330 = vmatpush.bf16.msra.mxu0 0
    %331 = vmatpush.bf16.msra.mxu0 0
    %332 = vmatpush.bf16.msra.mxu0 0
    %333 = vmatpush.bf16.msra.mxu0 %v305
    %334 = vmatmul.bf16.gmra.mxu0 %v296
    %v335 = vpop.f32.mrf.mxu0
    %v336 = vadd.f32 0.0, %v335
    %v337 = vpop.f32.mrf.mxu0
    %v338 = vadd.f32 0.0, %v337
    %339 = vmatmul.bf16.gmra.mxu0 %v299
    %v340 = vpop.f32.mrf.mxu0
    %v341 = vadd.f32 0.0, %v340
    %v342 = vpop.f32.mrf.mxu0
    %v343 = vadd.f32 0.0, %v342
    %344 = vdwg.mxu0
    %v345 = vadd.f32 %v261, %v317
    %v346 = vadd.f32 %v262, %v336
    %v347 = vadd.f32 %v263, %v319
    %v348 = vadd.f32 %v264, %v338
    %v349 = vadd.f32 %v265, %v322
    %v350 = vadd.f32 %v266, %v341
    %v351 = vadd.f32 %v267, %v324
    %v352 = vadd.f32 %v268, %v343
    %v353 = vld [vmem:[%s2] sm:$0xff]
    %v354 = vld [vmem:[%s2 + $0x8] sm:$0xff]
    %v355 = vld [vmem:[%s2 + $0x10] sm:$0xff]
    %v356 = vld [vmem:[%s2 + $0x18] sm:$0xff]
    %358 = vset.pattern.permute.xlu0 0
    %359 = vperm.xlu0 %358, %v353
    %v360 = vpop.permute.xlu0 %359
    %363 = vset.pattern.permute.xlu0 0
    %364 = vperm.xlu0 %363, %v354
    %v365 = vpop.permute.xlu0 %364
    %368 = vset.pattern.permute.xlu0 0
    %369 = vperm.xlu0 %368, %v355
    %v370 = vpop.permute.xlu0 %369
    %373 = vset.pattern.permute.xlu0 0
    %374 = vperm.xlu0 %373, %v356
    %v375 = vpop.permute.xlu0 %374
    %v377 = vadd.f32 %v345, %v360
    %v378 = vadd.f32 %v346, %v360
    %v379 = vadd.f32 %v347, %v365
    %v380 = vadd.f32 %v348, %v365
    %v381 = vadd.f32 %v349, %v370
    %v382 = vadd.f32 %v350, %v370
    %v383 = vadd.f32 %v351, %v375
    %v384 = vadd.f32 %v352, %v375
    %v385 = vmax.f32 %v377, 0.0
    %v386 = vmax.f32 %v378, 0.0
    %v387 = vmax.f32 %v379, 0.0
    %v388 = vmax.f32 %v380, 0.0
    %v389 = vmax.f32 %v381, 0.0
    %v390 = vmax.f32 %v382, 0.0
    %v391 = vmax.f32 %v383, 0.0
    %v392 = vmax.f32 %v384, 0.0
    %401 = vrot.lane.b32.xlu0 %v385, 127
    %v402 = vpop.permute.xlu0 %401
    %403 = vrot.lane.b32.xlu0 %v386, 127
    %v404 = vpop.permute.xlu0 %403
    %405 = vrot.lane.b32.xlu0 %v387, 127
    %v406 = vpop.permute.xlu0 %405
    %407 = vrot.lane.b32.xlu0 %v388, 127
    %v408 = vpop.permute.xlu0 %407
    %409 = vrot.lane.b32.xlu0 %v389, 127
    %v410 = vpop.permute.xlu0 %409
    %411 = vrot.lane.b32.xlu0 %v390, 127
    %v412 = vpop.permute.xlu0 %411
    %413 = vrot.lane.b32.xlu0 %v391, 127
    %v414 = vpop.permute.xlu0 %413
    %415 = vrot.lane.b32.xlu0 %v392, 127
    %v416 = vpop.permute.xlu0 %415
    %vm417 = vcmask 1039360
    %v418 = vsel %vm417, %v402, %v404
    %v419 = vsel %vm417, %v406, %v408
    %v420 = vsel %vm417, %v410, %v412
    %v421 = vsel %vm417, %v414, %v416
    %v430 = vmax.f32 %v385, %v418
    %v431 = vmax.f32 %v386, %v404
    %v432 = vmax.f32 %v387, %v419
    %v433 = vmax.f32 %v388, %v408
    %v434 = vmax.f32 %v389, %v420
    %v435 = vmax.f32 %v390, %v412
    %v436 = vmax.f32 %v391, %v421
    %v437 = vmax.f32 %v392, %v416
    %446 = vrot.lane.b32.xlu0 %v430, 112
    %v447 = vpop.permute.xlu0 %446
    %448 = vrot.lane.b32.xlu0 %v431, 112
    %v449 = vpop.permute.xlu0 %448
    %450 = vrot.lane.b32.xlu0 %v432, 112
    %v451 = vpop.permute.xlu0 %450
    %452 = vrot.lane.b32.xlu0 %v433, 112
    %v453 = vpop.permute.xlu0 %452
    %454 = vrot.lane.b32.xlu0 %v434, 112
    %v455 = vpop.permute.xlu0 %454
    %456 = vrot.lane.b32.xlu0 %v435, 112
    %v457 = vpop.permute.xlu0 %456
    %458 = vrot.lane.b32.xlu0 %v436, 112
    %v459 = vpop.permute.xlu0 %458
    %460 = vrot.lane.b32.xlu0 %v437, 112
    %v461 = vpop.permute.xlu0 %460
    %vm462 = vcmask 916480
    %v463 = vsel %vm462, %v447, %v449
    %v464 = vsel %vm462, %v451, %v453
    %v465 = vsel %vm462, %v455, %v457
    %v466 = vsel %vm462, %v459, %v461
    %v475 = vmax.f32 %v430, %v463
    %v476 = vmax.f32 %v431, %v449
    %v477 = vmax.f32 %v432, %v464
    %v478 = vmax.f32 %v433, %v453
    %v479 = vmax.f32 %v434, %v465
    %v480 = vmax.f32 %v435, %v457
    %v481 = vmax.f32 %v436, %v466
    %v482 = vmax.f32 %v437, %v461
    %v483 = vpack.c.bf16 %v477, %v475
    %v484 = vpack.c.bf16 %v478, %v476
    %v485 = vpack.c.bf16 %v481, %v479
    %v486 = vpack.c.bf16 %v482, %v480
    %v487 = vld [vmem:[%s3] sm:$0xf]
    %v488 = vld [vmem:[%s3 + $0x4] sm:$0xf]
    %v489 = vld [vmem:[%s3 + $0x8] sm:$0xf]
    %v490 = vld [vmem:[%s3 + $0xc] sm:$0xf]
    %v491 = vld [vmem:[%s3 + $0x10] sm:$0xf]
    %v492 = vld [vmem:[%s3 + $0x14] sm:$0xf]
    %v493 = vld [vmem:[%s3 + $0x18] sm:$0xf]
    %v494 = vld [vmem:[%s3 + $0x1c] sm:$0xf]
    %v495 = vld [vmem:[%s3 + $0x20] sm:$0xf]
    %v496 = vld [vmem:[%s3 + $0x24] sm:$0xf]
    %v497 = vld [vmem:[%s3 + $0x28] sm:$0xf]
    %v498 = vld [vmem:[%s3 + $0x2c] sm:$0xf]
    %v499 = vld [vmem:[%s3 + $0x30] sm:$0xf]
    %v500 = vld [vmem:[%s3 + $0x34] sm:$0xf]
    %v501 = vld [vmem:[%s3 + $0x38] sm:$0xf]
    %v502 = vld [vmem:[%s3 + $0x3c] sm:$0xf]
    %v503 = vld [vmem:[%s3 + $0x40] sm:$0xf]
    %v504 = vld [vmem:[%s3 + $0x44] sm:$0xf]
    %v505 = vld [vmem:[%s3 + $0x48] sm:$0xf]
    %v506 = vld [vmem:[%s3 + $0x4c] sm:$0xf]
    %v507 = vld [vmem:[%s3 + $0x50] sm:$0xf]
    %v508 = vld [vmem:[%s3 + $0x54] sm:$0xf]
    %v509 = vld [vmem:[%s3 + $0x58] sm:$0xf]
    %v510 = vld [vmem:[%s3 + $0x5c] sm:$0xf]
    %v511 = vld [vmem:[%s3 + $0x60] sm:$0xf]
    %v512 = vld [vmem:[%s3 + $0x64] sm:$0x7]
    %v539 = vunpack.c.l.b16 %v487
    %v540 = vunpack.c.l.b16 %v488
    %v541 = vunpack.c.l.b16 %v489
    %v542 = vunpack.c.l.b16 %v490
    %v543 = vunpack.c.l.b16 %v491
    %v544 = vunpack.c.l.b16 %v492
    %v545 = vunpack.c.l.b16 %v493
    %v546 = vunpack.c.l.b16 %v494
    %v547 = vunpack.c.l.b16 %v495
    %v548 = vunpack.c.l.b16 %v496
    %v549 = vunpack.c.l.b16 %v497
    %v550 = vunpack.c.l.b16 %v498
    %v551 = vunpack.c.l.b16 %v499
    %v552 = vunpack.c.l.b16 %v500
    %v553 = vunpack.c.l.b16 %v501
    %v554 = vunpack.c.l.b16 %v502
    %v555 = vunpack.c.l.b16 %v503
    %v556 = vunpack.c.l.b16 %v504
    %v557 = vunpack.c.l.b16 %v505
    %v558 = vunpack.c.l.b16 %v506
    %v559 = vunpack.c.l.b16 %v507
    %v560 = vunpack.c.l.b16 %v508
    %v561 = vunpack.c.l.b16 %v509
    %v562 = vunpack.c.l.b16 %v510
    %v563 = vunpack.c.l.b16 %v511
    %v564 = vunpack.c.l.b16 %v512
    %v565 = vpack.c.b16 %v540, %v539
    %v566 = vpack.c.b16 %v542, %v541
    %v567 = vpack.c.b16 %v544, %v543
    %v568 = vpack.c.b16 %v546, %v545
    %v569 = vpack.c.b16 %v548, %v547
    %v570 = vpack.c.b16 %v550, %v549
    %v571 = vpack.c.b16 %v552, %v551
    %v572 = vpack.c.b16 %v554, %v553
    %v573 = vpack.c.b16 %v556, %v555
    %v574 = vpack.c.b16 %v558, %v557
    %v575 = vpack.c.b16 %v560, %v559
    %v576 = vpack.c.b16 %v562, %v561
    %v577 = vpack.c.b16 %v564, %v563
    %vm590 = vcmask 629760
    %v592 = vsel %vm590, %v484, 0
    %v595 = vsel %vm590, %v486, 0
    %vm597 = vcmask 1045504
    %vm598 = vcmask 1046528
    %v599 = vsel %vm597, 4294967295, 65535
    %v600 = vsel %vm598, %v599, 0
    %v602 = vand.u32 %v577, %v600
    %604 = vmatpush.bf16.msra.mxu0 %v572
    %605 = vmatpush.bf16.msra.mxu0 %v571
    %606 = vmatpush.bf16.msra.mxu0 %v570
    %607 = vmatpush.bf16.msra.mxu0 %v569
    %608 = vmatpush.bf16.msra.mxu0 %v568
    %609 = vmatpush.bf16.msra.mxu0 %v567
    %610 = vmatpush.bf16.msra.mxu0 %v566
    %611 = vmatpush.bf16.msra.mxu0 %v565
    %612 = vmatmul.bf16.gmra.mxu0 %v483
    %v613 = vpop.f32.mrf.mxu0
    %v614 = vadd.f32 0.0, %v613
    %v615 = vpop.f32.mrf.mxu0
    %v616 = vadd.f32 0.0, %v615
    %617 = vmatmul.bf16.gmra.mxu0 %v485
    %v618 = vpop.f32.mrf.mxu0
    %v619 = vadd.f32 0.0, %v618
    %v620 = vpop.f32.mrf.mxu0
    %v621 = vadd.f32 0.0, %v620
    %622 = vdwg.mxu0
    %623 = vmatpush.bf16.msra.mxu0 0
    %624 = vmatpush.bf16.msra.mxu0 0
    %625 = vmatpush.bf16.msra.mxu0 0
    %626 = vmatpush.bf16.msra.mxu0 %v602
    %627 = vmatpush.bf16.msra.mxu0 %v576
    %628 = vmatpush.bf16.msra.mxu0 %v575
    %629 = vmatpush.bf16.msra.mxu0 %v574
    %630 = vmatpush.bf16.msra.mxu0 %v573
    %631 = vmatmul.bf16.gmra.mxu0 %v592
    %v632 = vpop.f32.mrf.mxu0
    %v633 = vadd.f32 %v614, %v632
    %v634 = vpop.f32.mrf.mxu0
    %v635 = vadd.f32 %v616, %v634
    %636 = vmatmul.bf16.gmra.mxu0 %v595
    %v637 = vpop.f32.mrf.mxu0
    %v638 = vadd.f32 %v619, %v637
    %v639 = vpop.f32.mrf.mxu0
    %v640 = vadd.f32 %v621, %v639
    %641 = vdwg.mxu0
    %v642 = vpack.c.bf16 %v633, %v633
    %v643 = vpack.c.bf16 %v635, %v635
    %v644 = vpack.c.bf16 %v638, %v638
    %v645 = vpack.c.bf16 %v640, %v640
    %v646 = vld [vmem:[%s4] sm:$0xf]
    %v647 = vld [vmem:[%s4 + $0x4] sm:$0xf]
    %v648 = vld [vmem:[%s4 + $0x8] sm:$0xf]
    %v649 = vld [vmem:[%s4 + $0xc] sm:$0xf]
    %v650 = vld [vmem:[%s4 + $0x10] sm:$0xf]
    %v651 = vld [vmem:[%s4 + $0x14] sm:$0xf]
    %v652 = vld [vmem:[%s4 + $0x18] sm:$0xf]
    %v653 = vld [vmem:[%s4 + $0x1c] sm:$0xf]
    %s654 = scalar_lea.vmem %s4, 32
    %v655 = vld [vmem:[%s654] sm:$0xf]
    %v656 = vld [vmem:[%s654 + $0x4] sm:$0xf]
    %v657 = vld [vmem:[%s654 + $0x8] sm:$0xf]
    %v658 = vld [vmem:[%s654 + $0xc] sm:$0xf]
    %v659 = vld [vmem:[%s654 + $0x10] sm:$0xf]
    %v660 = vld [vmem:[%s654 + $0x14] sm:$0xf]
    %v661 = vld [vmem:[%s654 + $0x18] sm:$0xf]
    %v662 = vld [vmem:[%s654 + $0x1c] sm:$0xf]
    %v671 = vunpack.c.l.b16 %v655
    %v672 = vunpack.c.l.b16 %v656
    %v673 = vunpack.c.l.b16 %v657
    %v674 = vunpack.c.l.b16 %v658
    %v675 = vunpack.c.l.b16 %v659
    %v676 = vunpack.c.l.b16 %v660
    %v677 = vunpack.c.l.b16 %v661
    %v678 = vunpack.c.l.b16 %v662
    %v679 = vpack.c.b16 %v672, %v671
    %v680 = vpack.c.b16 %v674, %v673
    %v681 = vpack.c.b16 %v676, %v675
    %v682 = vpack.c.b16 %v678, %v677
    %v687 = vunpack.c.l.b16 %v642
    %v688 = vunpack.c.l.b16 %v643
    %v689 = vunpack.c.l.b16 %v644
    %v690 = vunpack.c.l.b16 %v645
    %v691 = vpack.c.b16 %v688, %v687
    %v692 = vpack.c.b16 %v690, %v689
    %693 = vrot.lane.b32.xlu0 %v691, 127
    %v694 = vpop.permute.xlu0 %693
    %695 = vrot.lane.b32.xlu0 %v692, 127
    %v696 = vpop.permute.xlu0 %695
    %vm699 = vcmask 261120
    %v701 = vsel %vm699, %v679, 0
    %v704 = vsel %vm699, %v680, 0
    %v707 = vsel %vm699, %v681, 0
    %v710 = vsel %vm699, %v682, 0
    %712 = vmatpush.bf16.msra.mxu0 0
    %713 = vmatpush.bf16.msra.mxu0 0
    %714 = vmatpush.bf16.msra.mxu0 0
    %715 = vmatpush.bf16.msra.mxu0 0
    %716 = vmatpush.bf16.msra.mxu0 0
    %717 = vmatpush.bf16.msra.mxu0 0
    %718 = vmatpush.bf16.msra.mxu0 %v696
    %719 = vmatpush.bf16.msra.mxu0 %v694
    %720 = vmatmul.bf16.gmra.mxu0 %v701
    %v721 = vpop.f32.mrf.mxu0
    %v722 = vadd.f32 0.0, %v721
    %v723 = vpop.f32.mrf.mxu0
    %v724 = vadd.f32 0.0, %v723
    %725 = vmatmul.bf16.gmra.mxu0 %v704
    %v726 = vpop.f32.mrf.mxu0
    %v727 = vadd.f32 0.0, %v726
    %v728 = vpop.f32.mrf.mxu0
    %v729 = vadd.f32 0.0, %v728
    %730 = vmatmul.bf16.gmra.mxu0 %v707
    %v731 = vpop.f32.mrf.mxu0
    %v732 = vadd.f32 0.0, %v731
    %v733 = vpop.f32.mrf.mxu0
    %v734 = vadd.f32 0.0, %v733
    %735 = vmatmul.bf16.gmra.mxu0 %v710
    %v736 = vpop.f32.mrf.mxu0
    %v737 = vadd.f32 0.0, %v736
    %v738 = vpop.f32.mrf.mxu0
    %v739 = vadd.f32 0.0, %v738
    %740 = vdwg.mxu0
    %v749 = vunpack.c.l.b16 %v646
    %v750 = vunpack.c.l.b16 %v647
    %v751 = vunpack.c.l.b16 %v648
    %v752 = vunpack.c.l.b16 %v649
    %v753 = vunpack.c.l.b16 %v650
    %v754 = vunpack.c.l.b16 %v651
    %v755 = vunpack.c.l.b16 %v652
    %v756 = vunpack.c.l.b16 %v653
    %v757 = vpack.c.b16 %v750, %v749
    %v758 = vpack.c.b16 %v752, %v751
    %v759 = vpack.c.b16 %v754, %v753
    %v760 = vpack.c.b16 %v756, %v755
    %v764 = vsel %vm699, %v757, 0
    %v767 = vsel %vm699, %v758, 0
    %v770 = vsel %vm699, %v759, 0
    %v773 = vsel %vm699, %v760, 0
    %775 = vmatpush.bf16.msra.mxu0 0
    %776 = vmatpush.bf16.msra.mxu0 0
    %777 = vmatpush.bf16.msra.mxu0 0
    %778 = vmatpush.bf16.msra.mxu0 0
    %779 = vmatpush.bf16.msra.mxu0 0
    %780 = vmatpush.bf16.msra.mxu0 0
    %781 = vmatpush.bf16.msra.mxu0 %v692
    %782 = vmatpush.bf16.msra.mxu0 %v691
    %783 = vmatmul.bf16.gmra.mxu0 %v764
    %v784 = vpop.f32.mrf.mxu0
    %v785 = vadd.f32 %v722, %v784
    %v786 = vpop.f32.mrf.mxu0
    %v787 = vadd.f32 %v724, %v786
    %788 = vmatmul.bf16.gmra.mxu0 %v767
    %v789 = vpop.f32.mrf.mxu0
    %v790 = vadd.f32 %v727, %v789
    %v791 = vpop.f32.mrf.mxu0
    %v792 = vadd.f32 %v729, %v791
    %793 = vmatmul.bf16.gmra.mxu0 %v770
    %v794 = vpop.f32.mrf.mxu0
    %v795 = vadd.f32 %v732, %v794
    %v796 = vpop.f32.mrf.mxu0
    %v797 = vadd.f32 %v734, %v796
    %798 = vmatmul.bf16.gmra.mxu0 %v773
    %v799 = vpop.f32.mrf.mxu0
    %v800 = vadd.f32 %v737, %v799
    %v801 = vpop.f32.mrf.mxu0
    %v802 = vadd.f32 %v739, %v801
    %803 = vdwg.mxu0
    %s804 = scalar_lea.vmem %s4, 64
    %v805 = vld [vmem:[%s804] sm:$0xf]
    %v806 = vld [vmem:[%s804 + $0x4] sm:$0xf]
    %v807 = vld [vmem:[%s804 + $0x8] sm:$0xf]
    %v808 = vld [vmem:[%s804 + $0xc] sm:$0xf]
    %v809 = vld [vmem:[%s804 + $0x10] sm:$0xf]
    %v810 = vld [vmem:[%s804 + $0x14] sm:$0xf]
    %v811 = vld [vmem:[%s804 + $0x18] sm:$0xf]
    %v812 = vld [vmem:[%s804 + $0x1c] sm:$0xf]
    %v821 = vunpack.c.l.b16 %v805
    %v822 = vunpack.c.l.b16 %v806
    %v823 = vunpack.c.l.b16 %v807
    %v824 = vunpack.c.l.b16 %v808
    %v825 = vunpack.c.l.b16 %v809
    %v826 = vunpack.c.l.b16 %v810
    %v827 = vunpack.c.l.b16 %v811
    %v828 = vunpack.c.l.b16 %v812
    %v829 = vpack.c.b16 %v822, %v821
    %v830 = vpack.c.b16 %v824, %v823
    %v831 = vpack.c.b16 %v826, %v825
    %v832 = vpack.c.b16 %v828, %v827
    %833 = vrot.lane.b32.xlu0 %v691, 119
    %v834 = vpop.permute.xlu0 %833
    %835 = vrot.lane.b32.xlu0 %v692, 119
    %v836 = vpop.permute.xlu0 %835
    %v840 = vsel %vm699, %v829, 0
    %v843 = vsel %vm699, %v830, 0
    %v846 = vsel %vm699, %v831, 0
    %v849 = vsel %vm699, %v832, 0
    %851 = vmatpush.bf16.msra.mxu0 0
    %852 = vmatpush.bf16.msra.mxu0 0
    %853 = vmatpush.bf16.msra.mxu0 0
    %854 = vmatpush.bf16.msra.mxu0 0
    %855 = vmatpush.bf16.msra.mxu0 0
    %856 = vmatpush.bf16.msra.mxu0 0
    %857 = vmatpush.bf16.msra.mxu0 %v836
    %858 = vmatpush.bf16.msra.mxu0 %v834
    %859 = vmatmul.bf16.gmra.mxu0 %v840
    %v860 = vpop.f32.mrf.mxu0
    %v861 = vadd.f32 0.0, %v860
    %v862 = vpop.f32.mrf.mxu0
    %v863 = vadd.f32 0.0, %v862
    %864 = vmatmul.bf16.gmra.mxu0 %v843
    %v865 = vpop.f32.mrf.mxu0
    %v866 = vadd.f32 0.0, %v865
    %v867 = vpop.f32.mrf.mxu0
    %v868 = vadd.f32 0.0, %v867
    %869 = vmatmul.bf16.gmra.mxu0 %v846
    %v870 = vpop.f32.mrf.mxu0
    %v871 = vadd.f32 0.0, %v870
    %v872 = vpop.f32.mrf.mxu0
    %v873 = vadd.f32 0.0, %v872
    %874 = vmatmul.bf16.gmra.mxu0 %v849
    %v875 = vpop.f32.mrf.mxu0
    %v876 = vadd.f32 0.0, %v875
    %v877 = vpop.f32.mrf.mxu0
    %v878 = vadd.f32 0.0, %v877
    %879 = vdwg.mxu0
    %v880 = vadd.f32 %v785, %v861
    %v881 = vadd.f32 %v787, %v863
    %v882 = vadd.f32 %v790, %v866
    %v883 = vadd.f32 %v792, %v868
    %v884 = vadd.f32 %v795, %v871
    %v885 = vadd.f32 %v797, %v873
    %v886 = vadd.f32 %v800, %v876
    %v887 = vadd.f32 %v802, %v878
    %s888 = scalar_lea.vmem %s4, 96
    %v889 = vld [vmem:[%s888] sm:$0xf]
    %v890 = vld [vmem:[%s888 + $0x4] sm:$0xf]
    %v891 = vld [vmem:[%s888 + $0x8] sm:$0xf]
    %v892 = vld [vmem:[%s888 + $0xc] sm:$0xf]
    %v893 = vld [vmem:[%s888 + $0x10] sm:$0xf]
    %v894 = vld [vmem:[%s888 + $0x14] sm:$0xf]
    %v895 = vld [vmem:[%s888 + $0x18] sm:$0xf]
    %v896 = vld [vmem:[%s888 + $0x1c] sm:$0xf]
    %v905 = vunpack.c.l.b16 %v889
    %v906 = vunpack.c.l.b16 %v890
    %v907 = vunpack.c.l.b16 %v891
    %v908 = vunpack.c.l.b16 %v892
    %v909 = vunpack.c.l.b16 %v893
    %v910 = vunpack.c.l.b16 %v894
    %v911 = vunpack.c.l.b16 %v895
    %v912 = vunpack.c.l.b16 %v896
    %v913 = vpack.c.b16 %v906, %v905
    %v914 = vpack.c.b16 %v908, %v907
    %v915 = vpack.c.b16 %v910, %v909
    %v916 = vpack.c.b16 %v912, %v911
    %917 = vrot.lane.b32.xlu0 %v691, 118
    %v918 = vpop.permute.xlu0 %917
    %919 = vrot.lane.b32.xlu0 %v692, 118
    %v920 = vpop.permute.xlu0 %919
    %v924 = vsel %vm699, %v913, 0
    %v927 = vsel %vm699, %v914, 0
    %v930 = vsel %vm699, %v915, 0
    %v933 = vsel %vm699, %v916, 0
    %935 = vmatpush.bf16.msra.mxu0 0
    %936 = vmatpush.bf16.msra.mxu0 0
    %937 = vmatpush.bf16.msra.mxu0 0
    %938 = vmatpush.bf16.msra.mxu0 0
    %939 = vmatpush.bf16.msra.mxu0 0
    %940 = vmatpush.bf16.msra.mxu0 0
    %941 = vmatpush.bf16.msra.mxu0 %v920
    %942 = vmatpush.bf16.msra.mxu0 %v918
    %943 = vmatmul.bf16.gmra.mxu0 %v924
    %v944 = vpop.f32.mrf.mxu0
    %v945 = vadd.f32 0.0, %v944
    %v946 = vpop.f32.mrf.mxu0
    %v947 = vadd.f32 0.0, %v946
    %948 = vmatmul.bf16.gmra.mxu0 %v927
    %v949 = vpop.f32.mrf.mxu0
    %v950 = vadd.f32 0.0, %v949
    %v951 = vpop.f32.mrf.mxu0
    %v952 = vadd.f32 0.0, %v951
    %953 = vmatmul.bf16.gmra.mxu0 %v930
    %v954 = vpop.f32.mrf.mxu0
    %v955 = vadd.f32 0.0, %v954
    %v956 = vpop.f32.mrf.mxu0
    %v957 = vadd.f32 0.0, %v956
    %958 = vmatmul.bf16.gmra.mxu0 %v933
    %v959 = vpop.f32.mrf.mxu0
    %v960 = vadd.f32 0.0, %v959
    %v961 = vpop.f32.mrf.mxu0
    %v962 = vadd.f32 0.0, %v961
    %963 = vdwg.mxu0
    %v964 = vadd.f32 %v880, %v945
    %v965 = vadd.f32 %v881, %v947
    %v966 = vadd.f32 %v882, %v950
    %v967 = vadd.f32 %v883, %v952
    %v968 = vadd.f32 %v884, %v955
    %v969 = vadd.f32 %v885, %v957
    %v970 = vadd.f32 %v886, %v960
    %v971 = vadd.f32 %v887, %v962
    %v972 = vld [vmem:[%s5] sm:$0xff]
    %v973 = vld [vmem:[%s5 + $0x8] sm:$0xff]
    %v974 = vld [vmem:[%s5 + $0x10] sm:$0xff]
    %v975 = vld [vmem:[%s5 + $0x18] sm:$0xff]
    %v976 = vld [vmem:[%s5 + $0x20] sm:$0xff]
    %v977 = vld [vmem:[%s5 + $0x28] sm:$0xff]
    %v978 = vld [vmem:[%s5 + $0x30] sm:$0xff]
    %v979 = vld [vmem:[%s5 + $0x38] sm:$0xff]
    %981 = vset.pattern.permute.xlu0 0
    %982 = vperm.xlu0 %981, %v972
    %v983 = vpop.permute.xlu0 %982
    %986 = vset.pattern.permute.xlu0 0
    %987 = vperm.xlu0 %986, %v973
    %v988 = vpop.permute.xlu0 %987
    %991 = vset.pattern.permute.xlu0 0
    %992 = vperm.xlu0 %991, %v974
    %v993 = vpop.permute.xlu0 %992
    %996 = vset.pattern.permute.xlu0 0
    %997 = vperm.xlu0 %996, %v975
    %v998 = vpop.permute.xlu0 %997
    %1001 = vset.pattern.permute.xlu0 0
    %1002 = vperm.xlu0 %1001, %v976
    %v1003 = vpop.permute.xlu0 %1002
    %1006 = vset.pattern.permute.xlu0 0
    %1007 = vperm.xlu0 %1006, %v977
    %v1008 = vpop.permute.xlu0 %1007
    %1011 = vset.pattern.permute.xlu0 0
    %1012 = vperm.xlu0 %1011, %v978
    %v1013 = vpop.permute.xlu0 %1012
    %1016 = vset.pattern.permute.xlu0 0
    %1017 = vperm.xlu0 %1016, %v979
    %v1018 = vpop.permute.xlu0 %1017
    %v1020 = vadd.f32 %v964, %v983
    %v1021 = vadd.f32 %v965, %v988
    %v1022 = vadd.f32 %v966, %v993
    %v1023 = vadd.f32 %v967, %v998
    %v1024 = vadd.f32 %v968, %v1003
    %v1025 = vadd.f32 %v969, %v1008
    %v1026 = vadd.f32 %v970, %v1013
    %v1027 = vadd.f32 %v971, %v1018
    %v1028 = vmax.f32 %v1020, 0.0
    %v1029 = vmax.f32 %v1021, 0.0
    %v1030 = vmax.f32 %v1022, 0.0
    %v1031 = vmax.f32 %v1023, 0.0
    %v1032 = vmax.f32 %v1024, 0.0
    %v1033 = vmax.f32 %v1025, 0.0
    %v1034 = vmax.f32 %v1026, 0.0
    %v1035 = vmax.f32 %v1027, 0.0
    %1044 = vrot.lane.b32.xlu0 %v1028, 127
    %v1045 = vpop.permute.xlu0 %1044
    %1046 = vrot.lane.b32.xlu0 %v1029, 127
    %v1047 = vpop.permute.xlu0 %1046
    %1048 = vrot.lane.b32.xlu0 %v1030, 127
    %v1049 = vpop.permute.xlu0 %1048
    %1050 = vrot.lane.b32.xlu0 %v1031, 127
    %v1051 = vpop.permute.xlu0 %1050
    %1052 = vrot.lane.b32.xlu0 %v1032, 127
    %v1053 = vpop.permute.xlu0 %1052
    %1054 = vrot.lane.b32.xlu0 %v1033, 127
    %v1055 = vpop.permute.xlu0 %1054
    %1056 = vrot.lane.b32.xlu0 %v1034, 127
    %v1057 = vpop.permute.xlu0 %1056
    %1058 = vrot.lane.b32.xlu0 %v1035, 127
    %v1059 = vpop.permute.xlu0 %1058
    %v1068 = vmax.f32 %v1028, %v1045
    %v1069 = vmax.f32 %v1029, %v1047
    %v1070 = vmax.f32 %v1030, %v1049
    %v1071 = vmax.f32 %v1031, %v1051
    %v1072 = vmax.f32 %v1032, %v1053
    %v1073 = vmax.f32 %v1033, %v1055
    %v1074 = vmax.f32 %v1034, %v1057
    %v1075 = vmax.f32 %v1035, %v1059
    %1084 = vrot.lane.b32.xlu0 %v1068, 119
    %v1085 = vpop.permute.xlu0 %1084
    %1086 = vrot.lane.b32.xlu0 %v1069, 119
    %v1087 = vpop.permute.xlu0 %1086
    %1088 = vrot.lane.b32.xlu0 %v1070, 119
    %v1089 = vpop.permute.xlu0 %1088
    %1090 = vrot.lane.b32.xlu0 %v1071, 119
    %v1091 = vpop.permute.xlu0 %1090
    %1092 = vrot.lane.b32.xlu0 %v1072, 119
    %v1093 = vpop.permute.xlu0 %1092
    %1094 = vrot.lane.b32.xlu0 %v1073, 119
    %v1095 = vpop.permute.xlu0 %1094
    %1096 = vrot.lane.b32.xlu0 %v1074, 119
    %v1097 = vpop.permute.xlu0 %1096
    %1098 = vrot.lane.b32.xlu0 %v1075, 119
    %v1099 = vpop.permute.xlu0 %1098
    %v1108 = vmax.f32 %v1068, %v1085
    %v1109 = vmax.f32 %v1069, %v1087
    %v1110 = vmax.f32 %v1070, %v1089
    %v1111 = vmax.f32 %v1071, %v1091
    %v1112 = vmax.f32 %v1072, %v1093
    %v1113 = vmax.f32 %v1073, %v1095
    %v1114 = vmax.f32 %v1074, %v1097
    %v1115 = vmax.f32 %v1075, %v1099
    %1116 = vst [vmem:[#allocation2] sm:$0xff] 0.0
    %1117 = vst [vmem:[#allocation2 + $0x8] sm:$0xff] 0.0
    %1118 = vst [vmem:[#allocation2 + $0x10] sm:$0xff] 0.0
    %1119 = vst [vmem:[#allocation2 + $0x18] sm:$0xff] 0.0
    %1120 = vst [vmem:[#allocation2 + $0x20] sm:$0xff] 0.0
    %1121 = vst [vmem:[#allocation2 + $0x28] sm:$0xff] 0.0
    %1122 = vst [vmem:[#allocation2 + $0x30] sm:$0xff] 0.0
    %1123 = vst [vmem:[#allocation2 + $0x38] sm:$0xff] 0.0
    %vm1124 = vcmask 494592
    %1125 = vst.msk [vmem:[#allocation2] sm:$0xf] %vm1124, %v1108
    %1127 = vst.sshfl [vmem:[#allocation1] sm:$0xff pattern:$0x75316420] %v1108
    %s1128 = scalar_lea.vmem [#allocation1], 1
    %v1129 = vld [vmem:[%s1128] ss:$2 sm:$0xff]
    %1131 = vst.msk [vmem:[#allocation2 + $0x4] sm:$0xf] %vm1124, %v1129
    %1132 = vst.msk [vmem:[#allocation2 + $0x8] sm:$0xf] %vm1124, %v1109
    %1134 = vst.sshfl [vmem:[#allocation1] sm:$0xff pattern:$0x75316420] %v1109
    %s1135 = scalar_lea.vmem [#allocation1], 1
    %v1136 = vld [vmem:[%s1135] ss:$2 sm:$0xff]
    %1138 = vst.msk [vmem:[#allocation2 + $0xc] sm:$0xf] %vm1124, %v1136
    %1139 = vst.msk [vmem:[#allocation2 + $0x10] sm:$0xf] %vm1124, %v1110
    %1141 = vst.sshfl [vmem:[#allocation1] sm:$0xff pattern:$0x75316420] %v1110
    %s1142 = scalar_lea.vmem [#allocation1], 1
    %v1143 = vld [vmem:[%s1142] ss:$2 sm:$0xff]
    %1145 = vst.msk [vmem:[#allocation2 + $0x14] sm:$0xf] %vm1124, %v1143
    %1146 = vst.msk [vmem:[#allocation2 + $0x18] sm:$0xf] %vm1124, %v1111
    %1148 = vst.sshfl [vmem:[#allocation1] sm:$0xff pattern:$0x75316420] %v1111
    %s1149 = scalar_lea.vmem [#allocation1], 1
    %v1150 = vld [vmem:[%s1149] ss:$2 sm:$0xff]
    %1152 = vst.msk [vmem:[#allocation2 + $0x1c] sm:$0xf] %vm1124, %v1150
    %1153 = vst.msk [vmem:[#allocation2 + $0x20] sm:$0xf] %vm1124, %v1112
    %1155 = vst.sshfl [vmem:[#allocation1] sm:$0xff pattern:$0x75316420] %v1112
    %s1156 = scalar_lea.vmem [#allocation1], 1
    %v1157 = vld [vmem:[%s1156] ss:$2 sm:$0xff]
    %1159 = vst.msk [vmem:[#allocation2 + $0x24] sm:$0xf] %vm1124, %v1157
    %1160 = vst.msk [vmem:[#allocation2 + $0x28] sm:$0xf] %vm1124, %v1113
    %1162 = vst.sshfl [vmem:[#allocation1] sm:$0xff pattern:$0x75316420] %v1113
    %s1163 = scalar_lea.vmem [#allocation1], 1
    %v1164 = vld [vmem:[%s1163] ss:$2 sm:$0xff]
    %1166 = vst.msk [vmem:[#allocation2 + $0x2c] sm:$0xf] %vm1124, %v1164
    %1167 = vst.msk [vmem:[#allocation2 + $0x30] sm:$0xf] %vm1124, %v1114
    %1169 = vst.sshfl [vmem:[#allocation1] sm:$0xff pattern:$0x75316420] %v1114
    %s1170 = scalar_lea.vmem [#allocation1], 1
    %v1171 = vld [vmem:[%s1170] ss:$2 sm:$0xff]
    %1173 = vst.msk [vmem:[#allocation2 + $0x34] sm:$0xf] %vm1124, %v1171
    %1174 = vst.msk [vmem:[#allocation2 + $0x38] sm:$0xf] %vm1124, %v1115
    %1176 = vst.sshfl [vmem:[#allocation1] sm:$0xff pattern:$0x75316420] %v1115
    %s1177 = scalar_lea.vmem [#allocation1], 1
    %v1178 = vld [vmem:[%s1177] ss:$2 sm:$0xff]
    %1180 = vst.msk [vmem:[#allocation2 + $0x3c] sm:$0xf] %vm1124, %v1178
    %v1181 = vld [vmem:[#allocation2] sm:$0xff]
    %v1182 = vld [vmem:[#allocation2 + $0x8] sm:$0xff]
    %v1183 = vld [vmem:[#allocation2 + $0x10] sm:$0xff]
    %v1184 = vld [vmem:[#allocation2 + $0x18] sm:$0xff]
    %v1185 = vld [vmem:[#allocation2 + $0x20] sm:$0xff]
    %v1186 = vld [vmem:[#allocation2 + $0x28] sm:$0xff]
    %v1187 = vld [vmem:[#allocation2 + $0x30] sm:$0xff]
    %v1188 = vld [vmem:[#allocation2 + $0x38] sm:$0xff]
    %1197 = vst [vmem:[#allocation1] ss:$2 sm:$0xff] %v1181
    %s1198 = scalar_lea.vmem [#allocation1], 16
    %1199 = vst [vmem:[%s1198] ss:$2 sm:$0xff] %v1182
    %s1200 = scalar_lea.vmem [#allocation1], 32
    %1201 = vst [vmem:[%s1200] ss:$2 sm:$0xff] %v1183
    %s1202 = scalar_lea.vmem [#allocation1], 48
    %1203 = vst [vmem:[%s1202] ss:$2 sm:$0xff] %v1184
    %v1204 = vld.sshfl [vmem:[#allocation1] sm:$0xff pattern:$0x75316420]
    %v1205 = vld.sshfl [vmem:[#allocation1 + $0x8] sm:$0xff pattern:$0x75316420]
    %v1206 = vld.sshfl [vmem:[#allocation1 + $0x10] sm:$0xff pattern:$0x75316420]
    %v1207 = vld.sshfl [vmem:[#allocation1 + $0x18] sm:$0xff pattern:$0x75316420]
    %v1208 = vld.sshfl [vmem:[#allocation1 + $0x20] sm:$0xff pattern:$0x75316420]
    %v1209 = vld.sshfl [vmem:[#allocation1 + $0x28] sm:$0xff pattern:$0x75316420]
    %v1210 = vld.sshfl [vmem:[#allocation1 + $0x30] sm:$0xff pattern:$0x75316420]
    %v1211 = vld.sshfl [vmem:[#allocation1 + $0x38] sm:$0xff pattern:$0x75316420]
    %1212 = vst [vmem:[#allocation1] ss:$2 sm:$0xff] %v1185
    %1213 = vst [vmem:[%s1198] ss:$2 sm:$0xff] %v1186
    %1214 = vst [vmem:[%s1200] ss:$2 sm:$0xff] %v1187
    %1215 = vst [vmem:[%s1202] ss:$2 sm:$0xff] %v1188
    %v1216 = vld.sshfl [vmem:[#allocation1] sm:$0xff pattern:$0x75316420]
    %v1217 = vld.sshfl [vmem:[#allocation1 + $0x8] sm:$0xff pattern:$0x75316420]
    %v1218 = vld.sshfl [vmem:[#allocation1 + $0x10] sm:$0xff pattern:$0x75316420]
    %v1219 = vld.sshfl [vmem:[#allocation1 + $0x18] sm:$0xff pattern:$0x75316420]
    %v1220 = vld.sshfl [vmem:[#allocation1 + $0x20] sm:$0xff pattern:$0x75316420]
    %v1221 = vld.sshfl [vmem:[#allocation1 + $0x28] sm:$0xff pattern:$0x75316420]
    %v1222 = vld.sshfl [vmem:[#allocation1 + $0x30] sm:$0xff pattern:$0x75316420]
    %v1223 = vld.sshfl [vmem:[#allocation1 + $0x38] sm:$0xff pattern:$0x75316420]
    %v1240 = vpack.c.bf16 %v1204, %v1204
    %v1241 = vpack.c.bf16 %v1205, %v1205
    %v1242 = vpack.c.bf16 %v1206, %v1206
    %v1243 = vpack.c.bf16 %v1207, %v1207
    %v1244 = vpack.c.bf16 %v1208, %v1208
    %v1245 = vpack.c.bf16 %v1209, %v1209
    %v1246 = vpack.c.bf16 %v1210, %v1210
    %v1247 = vpack.c.bf16 %v1211, %v1211
    %v1248 = vpack.c.bf16 %v1216, %v1216
    %v1249 = vpack.c.bf16 %v1217, %v1217
    %v1250 = vpack.c.bf16 %v1218, %v1218
    %v1251 = vpack.c.bf16 %v1219, %v1219
    %v1252 = vpack.c.bf16 %v1220, %v1220
    %v1253 = vpack.c.bf16 %v1221, %v1221
    %v1254 = vpack.c.bf16 %v1222, %v1222
    %v1255 = vpack.c.bf16 %v1223, %v1223
    %v1256 = vld [vmem:[%s6] sm:$0xf]
    %v1257 = vld [vmem:[%s6 + $0x4] sm:$0xf]
    %v1258 = vld [vmem:[%s6 + $0x8] sm:$0xf]
    %v1259 = vld [vmem:[%s6 + $0xc] sm:$0xf]
    %v1260 = vld [vmem:[%s6 + $0x10] sm:$0xf]
    %v1261 = vld [vmem:[%s6 + $0x14] sm:$0xf]
    %v1262 = vld [vmem:[%s6 + $0x18] sm:$0xf]
    %v1263 = vld [vmem:[%s6 + $0x1c] sm:$0xf]
    %v1264 = vld [vmem:[%s6 + $0x20] sm:$0xf]
    %v1265 = vld [vmem:[%s6 + $0x24] sm:$0xf]
    %v1266 = vld [vmem:[%s6 + $0x28] sm:$0xf]
    %v1267 = vld [vmem:[%s6 + $0x2c] sm:$0xf]
    %v1268 = vld [vmem:[%s6 + $0x30] sm:$0xf]
    %v1269 = vld [vmem:[%s6 + $0x34] sm:$0xf]
    %v1270 = vld [vmem:[%s6 + $0x38] sm:$0xf]
    %v1271 = vld [vmem:[%s6 + $0x3c] sm:$0xf]
    %v1272 = vld [vmem:[%s6 + $0x40] sm:$0xf]
    %v1273 = vld [vmem:[%s6 + $0x44] sm:$0xf]
    %v1274 = vld [vmem:[%s6 + $0x48] sm:$0xf]
    %v1275 = vld [vmem:[%s6 + $0x4c] sm:$0xf]
    %v1276 = vld [vmem:[%s6 + $0x50] sm:$0xf]
    %v1277 = vld [vmem:[%s6 + $0x54] sm:$0xf]
    %v1278 = vld [vmem:[%s6 + $0x58] sm:$0xf]
    %v1279 = vld [vmem:[%s6 + $0x5c] sm:$0xf]
    %v1280 = vld [vmem:[%s6 + $0x60] sm:$0xf]
    %v1281 = vld [vmem:[%s6 + $0x64] sm:$0xf]
    %v1282 = vld [vmem:[%s6 + $0x68] sm:$0xf]
    %v1283 = vld [vmem:[%s6 + $0x6c] sm:$0xf]
    %v1284 = vld [vmem:[%s6 + $0x70] sm:$0xf]
    %v1285 = vld [vmem:[%s6 + $0x74] sm:$0xf]
    %v1286 = vld [vmem:[%s6 + $0x78] sm:$0xf]
    %v1287 = vld [vmem:[%s6 + $0x7c] sm:$0xf]
    %v1288 = vld [vmem:[%s6 + $0x80] sm:$0xf]
    %v1289 = vld [vmem:[%s6 + $0x84] sm:$0xf]
    %v1290 = vld [vmem:[%s6 + $0x88] sm:$0xf]
    %v1291 = vld [vmem:[%s6 + $0x8c] sm:$0xf]
    %v1292 = vld [vmem:[%s6 + $0x90] sm:$0xf]
    %v1293 = vld [vmem:[%s6 + $0x94] sm:$0xf]
    %v1294 = vld [vmem:[%s6 + $0x98] sm:$0xf]
    %v1295 = vld [vmem:[%s6 + $0x9c] sm:$0xf]
    %v1296 = vld [vmem:[%s6 + $0xa0] sm:$0xf]
    %v1297 = vld [vmem:[%s6 + $0xa4] sm:$0xf]
    %v1298 = vld [vmem:[%s6 + $0xa8] sm:$0xf]
    %v1299 = vld [vmem:[%s6 + $0xac] sm:$0xf]
    %v1300 = vld [vmem:[%s6 + $0xb0] sm:$0xf]
    %v1301 = vld [vmem:[%s6 + $0xb4] sm:$0xf]
    %v1302 = vld [vmem:[%s6 + $0xb8] sm:$0xf]
    %v1303 = vld [vmem:[%s6 + $0xbc] sm:$0xf]
    %v1304 = vld [vmem:[%s6 + $0xc0] sm:$0xf]
    %v1305 = vld [vmem:[%s6 + $0xc4] sm:$0xf]
    %v1306 = vld [vmem:[%s6 + $0xc8] sm:$0xf]
    %v1307 = vld [vmem:[%s6 + $0xcc] sm:$0xf]
    %v1308 = vld [vmem:[%s6 + $0xd0] sm:$0xf]
    %v1309 = vld [vmem:[%s6 + $0xd4] sm:$0xf]
    %v1310 = vld [vmem:[%s6 + $0xd8] sm:$0xf]
    %v1311 = vld [vmem:[%s6 + $0xdc] sm:$0xf]
    %v1312 = vld [vmem:[%s6 + $0xe0] sm:$0xf]
    %v1313 = vld [vmem:[%s6 + $0xe4] sm:$0xf]
    %v1314 = vld [vmem:[%s6 + $0xe8] sm:$0xf]
    %v1315 = vld [vmem:[%s6 + $0xec] sm:$0xf]
    %v1316 = vld [vmem:[%s6 + $0xf0] sm:$0xf]
    %v1317 = vld [vmem:[%s6 + $0xf4] sm:$0xf]
    %v1318 = vld [vmem:[%s6 + $0xf8] sm:$0xf]
    %v1319 = vld [vmem:[%s6 + $0xfc] sm:$0xf]
    %v1320 = vld [vmem:[%s6 + $0x100] sm:$0xf]
    %v1321 = vld [vmem:[%s6 + $0x104] sm:$0xf]
    %v1322 = vld [vmem:[%s6 + $0x108] sm:$0xf]
    %v1323 = vld [vmem:[%s6 + $0x10c] sm:$0xf]
    %v1324 = vld [vmem:[%s6 + $0x110] sm:$0xf]
    %v1325 = vld [vmem:[%s6 + $0x114] sm:$0xf]
    %v1326 = vld [vmem:[%s6 + $0x118] sm:$0xf]
    %v1327 = vld [vmem:[%s6 + $0x11c] sm:$0xf]
    %v1328 = vld [vmem:[%s6 + $0x120] sm:$0xf]
    %v1329 = vld [vmem:[%s6 + $0x124] sm:$0xf]
    %v1330 = vld [vmem:[%s6 + $0x128] sm:$0xf]
    %v1331 = vld [vmem:[%s6 + $0x12c] sm:$0xf]
    %v1332 = vld [vmem:[%s6 + $0x130] sm:$0xf]
    %v1333 = vld [vmem:[%s6 + $0x134] sm:$0xf]
    %v1334 = vld [vmem:[%s6 + $0x138] sm:$0xf]
    %v1335 = vld [vmem:[%s6 + $0x13c] sm:$0xf]
    %v1336 = vld [vmem:[%s6 + $0x140] sm:$0xf]
    %v1337 = vld [vmem:[%s6 + $0x144] sm:$0xf]
    %v1338 = vld [vmem:[%s6 + $0x148] sm:$0xf]
    %v1339 = vld [vmem:[%s6 + $0x14c] sm:$0xf]
    %v1340 = vld [vmem:[%s6 + $0x150] sm:$0xf]
    %v1341 = vld [vmem:[%s6 + $0x154] sm:$0xf]
    %v1342 = vld [vmem:[%s6 + $0x158] sm:$0xf]
    %v1343 = vld [vmem:[%s6 + $0x15c] sm:$0xf]
    %v1344 = vld [vmem:[%s6 + $0x160] sm:$0xf]
    %v1345 = vld [vmem:[%s6 + $0x164] sm:$0xf]
    %v1346 = vld [vmem:[%s6 + $0x168] sm:$0xf]
    %v1347 = vld [vmem:[%s6 + $0x16c] sm:$0xf]
    %v1348 = vld [vmem:[%s6 + $0x170] sm:$0xf]
    %v1349 = vld [vmem:[%s6 + $0x174] sm:$0xf]
    %v1350 = vld [vmem:[%s6 + $0x178] sm:$0xf]
    %v1351 = vld [vmem:[%s6 + $0x17c] sm:$0xf]
    %v1352 = vld [vmem:[%s6 + $0x180] sm:$0xf]
    %v1353 = vld [vmem:[%s6 + $0x184] sm:$0xf]
    %v1354 = vld [vmem:[%s6 + $0x188] sm:$0xf]
    %v1355 = vld [vmem:[%s6 + $0x18c] sm:$0xf]
    %v1356 = vld [vmem:[%s6 + $0x190] sm:$0xf]
    %v1357 = vld [vmem:[%s6 + $0x194] sm:$0xf]
    %v1358 = vld [vmem:[%s6 + $0x198] sm:$0xf]
    %v1359 = vld [vmem:[%s6 + $0x19c] sm:$0xf]
    %v1360 = vld [vmem:[%s6 + $0x1a0] sm:$0xf]
    %v1361 = vld [vmem:[%s6 + $0x1a4] sm:$0xf]
    %v1362 = vld [vmem:[%s6 + $0x1a8] sm:$0xf]
    %v1363 = vld [vmem:[%s6 + $0x1ac] sm:$0xf]
    %v1364 = vld [vmem:[%s6 + $0x1b0] sm:$0xf]
    %v1365 = vld [vmem:[%s6 + $0x1b4] sm:$0xf]
    %v1366 = vld [vmem:[%s6 + $0x1b8] sm:$0xf]
    %v1367 = vld [vmem:[%s6 + $0x1bc] sm:$0xf]
    %v1368 = vld [vmem:[%s6 + $0x1c0] sm:$0xf]
    %v1369 = vld [vmem:[%s6 + $0x1c4] sm:$0xf]
    %v1370 = vld [vmem:[%s6 + $0x1c8] sm:$0xf]
    %v1371 = vld [vmem:[%s6 + $0x1cc] sm:$0xf]
    %v1372 = vld [vmem:[%s6 + $0x1d0] sm:$0xf]
    %v1373 = vld [vmem:[%s6 + $0x1d4] sm:$0xf]
    %v1374 = vld [vmem:[%s6 + $0x1d8] sm:$0xf]
    %v1375 = vld [vmem:[%s6 + $0x1dc] sm:$0xf]
    %v1376 = vld [vmem:[%s6 + $0x1e0] sm:$0xf]
    %v1377 = vld [vmem:[%s6 + $0x1e4] sm:$0xf]
    %v1378 = vld [vmem:[%s6 + $0x1e8] sm:$0xf]
    %v1379 = vld [vmem:[%s6 + $0x1ec] sm:$0xf]
    %v1380 = vld [vmem:[%s6 + $0x1f0] sm:$0xf]
    %v1381 = vld [vmem:[%s6 + $0x1f4] sm:$0xf]
    %v1382 = vld [vmem:[%s6 + $0x1f8] sm:$0xf]
    %v1383 = vld [vmem:[%s6 + $0x1fc] sm:$0xf]
    %v1384 = vld [vmem:[%s6 + $0x200] sm:$0xf]
    %v1385 = vld [vmem:[%s6 + $0x204] sm:$0xf]
    %v1386 = vld [vmem:[%s6 + $0x208] sm:$0xf]
    %v1387 = vld [vmem:[%s6 + $0x20c] sm:$0xf]
    %v1388 = vld [vmem:[%s6 + $0x210] sm:$0xf]
    %v1389 = vld [vmem:[%s6 + $0x214] sm:$0xf]
    %v1390 = vld [vmem:[%s6 + $0x218] sm:$0xf]
    %v1391 = vld [vmem:[%s6 + $0x21c] sm:$0xf]
    %v1392 = vld [vmem:[%s6 + $0x220] sm:$0xf]
    %v1393 = vld [vmem:[%s6 + $0x224] sm:$0xf]
    %v1394 = vld [vmem:[%s6 + $0x228] sm:$0xf]
    %v1395 = vld [vmem:[%s6 + $0x22c] sm:$0xf]
    %v1396 = vld [vmem:[%s6 + $0x230] sm:$0xf]
    %v1397 = vld [vmem:[%s6 + $0x234] sm:$0xf]
    %v1398 = vld [vmem:[%s6 + $0x238] sm:$0xf]
    %v1399 = vld [vmem:[%s6 + $0x23c] sm:$0xf]
    %v1400 = vld [vmem:[%s6 + $0x240] sm:$0xf]
    %v1401 = vld [vmem:[%s6 + $0x244] sm:$0xf]
    %v1402 = vld [vmem:[%s6 + $0x248] sm:$0xf]
    %v1403 = vld [vmem:[%s6 + $0x24c] sm:$0xf]
    %v1404 = vld [vmem:[%s6 + $0x250] sm:$0xf]
    %v1405 = vld [vmem:[%s6 + $0x254] sm:$0xf]
    %v1406 = vld [vmem:[%s6 + $0x258] sm:$0xf]
    %v1407 = vld [vmem:[%s6 + $0x25c] sm:$0xf]
    %v1408 = vld [vmem:[%s6 + $0x260] sm:$0xf]
    %v1409 = vld [vmem:[%s6 + $0x264] sm:$0xf]
    %v1410 = vld [vmem:[%s6 + $0x268] sm:$0xf]
    %v1411 = vld [vmem:[%s6 + $0x26c] sm:$0xf]
    %v1412 = vld [vmem:[%s6 + $0x270] sm:$0xf]
    %v1413 = vld [vmem:[%s6 + $0x274] sm:$0xf]
    %v1414 = vld [vmem:[%s6 + $0x278] sm:$0xf]
    %v1415 = vld [vmem:[%s6 + $0x27c] sm:$0xf]
    %v1416 = vld [vmem:[%s6 + $0x280] sm:$0xf]
    %v1417 = vld [vmem:[%s6 + $0x284] sm:$0xf]
    %v1418 = vld [vmem:[%s6 + $0x288] sm:$0xf]
    %v1419 = vld [vmem:[%s6 + $0x28c] sm:$0xf]
    %v1420 = vld [vmem:[%s6 + $0x290] sm:$0xf]
    %v1421 = vld [vmem:[%s6 + $0x294] sm:$0xf]
    %v1422 = vld [vmem:[%s6 + $0x298] sm:$0xf]
    %v1423 = vld [vmem:[%s6 + $0x29c] sm:$0xf]
    %v1424 = vld [vmem:[%s6 + $0x2a0] sm:$0xf]
    %v1425 = vld [vmem:[%s6 + $0x2a4] sm:$0xf]
    %v1426 = vld [vmem:[%s6 + $0x2a8] sm:$0xf]
    %v1427 = vld [vmem:[%s6 + $0x2ac] sm:$0xf]
    %v1428 = vld [vmem:[%s6 + $0x2b0] sm:$0xf]
    %v1429 = vld [vmem:[%s6 + $0x2b4] sm:$0xf]
    %v1430 = vld [vmem:[%s6 + $0x2b8] sm:$0xf]
    %v1431 = vld [vmem:[%s6 + $0x2bc] sm:$0xf]
    %v1432 = vld [vmem:[%s6 + $0x2c0] sm:$0xf]
    %v1433 = vld [vmem:[%s6 + $0x2c4] sm:$0xf]
    %v1434 = vld [vmem:[%s6 + $0x2c8] sm:$0xf]
    %v1435 = vld [vmem:[%s6 + $0x2cc] sm:$0xf]
    %v1436 = vld [vmem:[%s6 + $0x2d0] sm:$0xf]
    %v1437 = vld [vmem:[%s6 + $0x2d4] sm:$0xf]
    %v1438 = vld [vmem:[%s6 + $0x2d8] sm:$0xf]
    %v1439 = vld [vmem:[%s6 + $0x2dc] sm:$0xf]
    %v1440 = vld [vmem:[%s6 + $0x2e0] sm:$0xf]
    %v1441 = vld [vmem:[%s6 + $0x2e4] sm:$0xf]
    %v1442 = vld [vmem:[%s6 + $0x2e8] sm:$0xf]
    %v1443 = vld [vmem:[%s6 + $0x2ec] sm:$0xf]
    %v1444 = vld [vmem:[%s6 + $0x2f0] sm:$0xf]
    %v1445 = vld [vmem:[%s6 + $0x2f4] sm:$0xf]
    %v1446 = vld [vmem:[%s6 + $0x2f8] sm:$0xf]
    %v1447 = vld [vmem:[%s6 + $0x2fc] sm:$0xf]
    %v1448 = vld [vmem:[%s6 + $0x300] sm:$0xf]
    %v1449 = vld [vmem:[%s6 + $0x304] sm:$0xf]
    %v1450 = vld [vmem:[%s6 + $0x308] sm:$0xf]
    %v1451 = vld [vmem:[%s6 + $0x30c] sm:$0xf]
    %v1452 = vld [vmem:[%s6 + $0x310] sm:$0xf]
    %v1453 = vld [vmem:[%s6 + $0x314] sm:$0xf]
    %v1454 = vld [vmem:[%s6 + $0x318] sm:$0xf]
    %v1455 = vld [vmem:[%s6 + $0x31c] sm:$0xf]
    %v1456 = vld [vmem:[%s6 + $0x320] sm:$0xf]
    %v1457 = vld [vmem:[%s6 + $0x324] sm:$0xf]
    %v1458 = vld [vmem:[%s6 + $0x328] sm:$0xf]
    %v1459 = vld [vmem:[%s6 + $0x32c] sm:$0xf]
    %v1460 = vld [vmem:[%s6 + $0x330] sm:$0xf]
    %v1461 = vld [vmem:[%s6 + $0x334] sm:$0xf]
    %v1462 = vld [vmem:[%s6 + $0x338] sm:$0xf]
    %v1463 = vld [vmem:[%s6 + $0x33c] sm:$0xf]
    %v1464 = vld [vmem:[%s6 + $0x340] sm:$0xf]
    %v1465 = vld [vmem:[%s6 + $0x344] sm:$0xf]
    %v1466 = vld [vmem:[%s6 + $0x348] sm:$0xf]
    %v1467 = vld [vmem:[%s6 + $0x34c] sm:$0xf]
    %v1468 = vld [vmem:[%s6 + $0x350] sm:$0xf]
    %v1469 = vld [vmem:[%s6 + $0x354] sm:$0xf]
    %v1470 = vld [vmem:[%s6 + $0x358] sm:$0xf]
    %v1471 = vld [vmem:[%s6 + $0x35c] sm:$0xf]
    %v1472 = vld [vmem:[%s6 + $0x360] sm:$0xf]
    %v1473 = vld [vmem:[%s6 + $0x364] sm:$0xf]
    %v1474 = vld [vmem:[%s6 + $0x368] sm:$0xf]
    %v1475 = vld [vmem:[%s6 + $0x36c] sm:$0xf]
    %v1476 = vld [vmem:[%s6 + $0x370] sm:$0xf]
    %v1477 = vld [vmem:[%s6 + $0x374] sm:$0xf]
    %v1478 = vld [vmem:[%s6 + $0x378] sm:$0xf]
    %v1479 = vld [vmem:[%s6 + $0x37c] sm:$0xf]
    %v1480 = vld [vmem:[%s6 + $0x380] sm:$0xf]
    %v1481 = vld [vmem:[%s6 + $0x384] sm:$0xf]
    %v1482 = vld [vmem:[%s6 + $0x388] sm:$0xf]
    %v1483 = vld [vmem:[%s6 + $0x38c] sm:$0xf]
    %v1484 = vld [vmem:[%s6 + $0x390] sm:$0xf]
    %v1485 = vld [vmem:[%s6 + $0x394] sm:$0xf]
    %v1486 = vld [vmem:[%s6 + $0x398] sm:$0xf]
    %v1487 = vld [vmem:[%s6 + $0x39c] sm:$0xf]
    %v1488 = vld [vmem:[%s6 + $0x3a0] sm:$0xf]
    %v1489 = vld [vmem:[%s6 + $0x3a4] sm:$0xf]
    %v1490 = vld [vmem:[%s6 + $0x3a8] sm:$0xf]
    %v1491 = vld [vmem:[%s6 + $0x3ac] sm:$0xf]
    %v1492 = vld [vmem:[%s6 + $0x3b0] sm:$0xf]
    %v1493 = vld [vmem:[%s6 + $0x3b4] sm:$0xf]
    %v1494 = vld [vmem:[%s6 + $0x3b8] sm:$0xf]
    %v1495 = vld [vmem:[%s6 + $0x3bc] sm:$0xf]
    %v1496 = vld [vmem:[%s6 + $0x3c0] sm:$0xf]
    %v1497 = vld [vmem:[%s6 + $0x3c4] sm:$0xf]
    %v1498 = vld [vmem:[%s6 + $0x3c8] sm:$0xf]
    %v1499 = vld [vmem:[%s6 + $0x3cc] sm:$0xf]
    %v1500 = vld [vmem:[%s6 + $0x3d0] sm:$0xf]
    %v1501 = vld [vmem:[%s6 + $0x3d4] sm:$0xf]
    %v1502 = vld [vmem:[%s6 + $0x3d8] sm:$0xf]
    %v1503 = vld [vmem:[%s6 + $0x3dc] sm:$0xf]
    %v1504 = vld [vmem:[%s6 + $0x3e0] sm:$0xf]
    %v1505 = vld [vmem:[%s6 + $0x3e4] sm:$0xf]
    %v1506 = vld [vmem:[%s6 + $0x3e8] sm:$0xf]
    %v1507 = vld [vmem:[%s6 + $0x3ec] sm:$0xf]
    %v1508 = vld [vmem:[%s6 + $0x3f0] sm:$0xf]
    %v1509 = vld [vmem:[%s6 + $0x3f4] sm:$0xf]
    %v1510 = vld [vmem:[%s6 + $0x3f8] sm:$0xf]
    %v1511 = vld [vmem:[%s6 + $0x3fc] sm:$0xf]
    %v1768 = vunpack.c.l.b16 %v1256
    %v1769 = vunpack.c.l.b16 %v1257
    %v1770 = vunpack.c.l.b16 %v1258
    %v1771 = vunpack.c.l.b16 %v1259
    %v1772 = vunpack.c.l.b16 %v1260
    %v1773 = vunpack.c.l.b16 %v1261
    %v1774 = vunpack.c.l.b16 %v1262
    %v1775 = vunpack.c.l.b16 %v1263
    %v1776 = vunpack.c.l.b16 %v1264
    %v1777 = vunpack.c.l.b16 %v1265
    %v1778 = vunpack.c.l.b16 %v1266
    %v1779 = vunpack.c.l.b16 %v1267
    %v1780 = vunpack.c.l.b16 %v1268
    %v1781 = vunpack.c.l.b16 %v1269
    %v1782 = vunpack.c.l.b16 %v1270
    %v1783 = vunpack.c.l.b16 %v1271
    %v1784 = vunpack.c.l.b16 %v1272
    %v1785 = vunpack.c.l.b16 %v1273
    %v1786 = vunpack.c.l.b16 %v1274
    %v1787 = vunpack.c.l.b16 %v1275
    %v1788 = vunpack.c.l.b16 %v1276
    %v1789 = vunpack.c.l.b16 %v1277
    %v1790 = vunpack.c.l.b16 %v1278
    %v1791 = vunpack.c.l.b16 %v1279
    %v1792 = vunpack.c.l.b16 %v1280
    %v1793 = vunpack.c.l.b16 %v1281
    %v1794 = vunpack.c.l.b16 %v1282
    %v1795 = vunpack.c.l.b16 %v1283
    %v1796 = vunpack.c.l.b16 %v1284
    %v1797 = vunpack.c.l.b16 %v1285
    %v1798 = vunpack.c.l.b16 %v1286
    %v1799 = vunpack.c.l.b16 %v1287
    %v1800 = vunpack.c.l.b16 %v1288
    %v1801 = vunpack.c.l.b16 %v1289
    %v1802 = vunpack.c.l.b16 %v1290
    %v1803 = vunpack.c.l.b16 %v1291
    %v1804 = vunpack.c.l.b16 %v1292
    %v1805 = vunpack.c.l.b16 %v1293
    %v1806 = vunpack.c.l.b16 %v1294
    %v1807 = vunpack.c.l.b16 %v1295
    %v1808 = vunpack.c.l.b16 %v1296
    %v1809 = vunpack.c.l.b16 %v1297
    %v1810 = vunpack.c.l.b16 %v1298
    %v1811 = vunpack.c.l.b16 %v1299
    %v1812 = vunpack.c.l.b16 %v1300
    %v1813 = vunpack.c.l.b16 %v1301
    %v1814 = vunpack.c.l.b16 %v1302
    %v1815 = vunpack.c.l.b16 %v1303
    %v1816 = vunpack.c.l.b16 %v1304
    %v1817 = vunpack.c.l.b16 %v1305
    %v1818 = vunpack.c.l.b16 %v1306
    %v1819 = vunpack.c.l.b16 %v1307
    %v1820 = vunpack.c.l.b16 %v1308
    %v1821 = vunpack.c.l.b16 %v1309
    %v1822 = vunpack.c.l.b16 %v1310
    %v1823 = vunpack.c.l.b16 %v1311
    %v1824 = vunpack.c.l.b16 %v1312
    %v1825 = vunpack.c.l.b16 %v1313
    %v1826 = vunpack.c.l.b16 %v1314
    %v1827 = vunpack.c.l.b16 %v1315
    %v1828 = vunpack.c.l.b16 %v1316
    %v1829 = vunpack.c.l.b16 %v1317
    %v1830 = vunpack.c.l.b16 %v1318
    %v1831 = vunpack.c.l.b16 %v1319
    %v1832 = vunpack.c.l.b16 %v1320
    %v1833 = vunpack.c.l.b16 %v1321
    %v1834 = vunpack.c.l.b16 %v1322
    %v1835 = vunpack.c.l.b16 %v1323
    %v1836 = vunpack.c.l.b16 %v1324
    %v1837 = vunpack.c.l.b16 %v1325
    %v1838 = vunpack.c.l.b16 %v1326
    %v1839 = vunpack.c.l.b16 %v1327
    %v1840 = vunpack.c.l.b16 %v1328
    %v1841 = vunpack.c.l.b16 %v1329
    %v1842 = vunpack.c.l.b16 %v1330
    %v1843 = vunpack.c.l.b16 %v1331
    %v1844 = vunpack.c.l.b16 %v1332
    %v1845 = vunpack.c.l.b16 %v1333
    %v1846 = vunpack.c.l.b16 %v1334
    %v1847 = vunpack.c.l.b16 %v1335
    %v1848 = vunpack.c.l.b16 %v1336
    %v1849 = vunpack.c.l.b16 %v1337
    %v1850 = vunpack.c.l.b16 %v1338
    %v1851 = vunpack.c.l.b16 %v1339
    %v1852 = vunpack.c.l.b16 %v1340
    %v1853 = vunpack.c.l.b16 %v1341
    %v1854 = vunpack.c.l.b16 %v1342
    %v1855 = vunpack.c.l.b16 %v1343
    %v1856 = vunpack.c.l.b16 %v1344
    %v1857 = vunpack.c.l.b16 %v1345
    %v1858 = vunpack.c.l.b16 %v1346
    %v1859 = vunpack.c.l.b16 %v1347
    %v1860 = vunpack.c.l.b16 %v1348
    %v1861 = vunpack.c.l.b16 %v1349
    %v1862 = vunpack.c.l.b16 %v1350
    %v1863 = vunpack.c.l.b16 %v1351
    %v1864 = vunpack.c.l.b16 %v1352
    %v1865 = vunpack.c.l.b16 %v1353
    %v1866 = vunpack.c.l.b16 %v1354
    %v1867 = vunpack.c.l.b16 %v1355
    %v1868 = vunpack.c.l.b16 %v1356
    %v1869 = vunpack.c.l.b16 %v1357
    %v1870 = vunpack.c.l.b16 %v1358
    %v1871 = vunpack.c.l.b16 %v1359
    %v1872 = vunpack.c.l.b16 %v1360
    %v1873 = vunpack.c.l.b16 %v1361
    %v1874 = vunpack.c.l.b16 %v1362
    %v1875 = vunpack.c.l.b16 %v1363
    %v1876 = vunpack.c.l.b16 %v1364
    %v1877 = vunpack.c.l.b16 %v1365
    %v1878 = vunpack.c.l.b16 %v1366
    %v1879 = vunpack.c.l.b16 %v1367
    %v1880 = vunpack.c.l.b16 %v1368
    %v1881 = vunpack.c.l.b16 %v1369
    %v1882 = vunpack.c.l.b16 %v1370
    %v1883 = vunpack.c.l.b16 %v1371
    %v1884 = vunpack.c.l.b16 %v1372
    %v1885 = vunpack.c.l.b16 %v1373
    %v1886 = vunpack.c.l.b16 %v1374
    %v1887 = vunpack.c.l.b16 %v1375
    %v1888 = vunpack.c.l.b16 %v1376
    %v1889 = vunpack.c.l.b16 %v1377
    %v1890 = vunpack.c.l.b16 %v1378
    %v1891 = vunpack.c.l.b16 %v1379
    %v1892 = vunpack.c.l.b16 %v1380
    %v1893 = vunpack.c.l.b16 %v1381
    %v1894 = vunpack.c.l.b16 %v1382
    %v1895 = vunpack.c.l.b16 %v1383
    %v1896 = vunpack.c.l.b16 %v1384
    %v1897 = vunpack.c.l.b16 %v1385
    %v1898 = vunpack.c.l.b16 %v1386
    %v1899 = vunpack.c.l.b16 %v1387
    %v1900 = vunpack.c.l.b16 %v1388
    %v1901 = vunpack.c.l.b16 %v1389
    %v1902 = vunpack.c.l.b16 %v1390
    %v1903 = vunpack.c.l.b16 %v1391
    %v1904 = vunpack.c.l.b16 %v1392
    %v1905 = vunpack.c.l.b16 %v1393
    %v1906 = vunpack.c.l.b16 %v1394
    %v1907 = vunpack.c.l.b16 %v1395
    %v1908 = vunpack.c.l.b16 %v1396
    %v1909 = vunpack.c.l.b16 %v1397
    %v1910 = vunpack.c.l.b16 %v1398
    %v1911 = vunpack.c.l.b16 %v1399
    %v1912 = vunpack.c.l.b16 %v1400
    %v1913 = vunpack.c.l.b16 %v1401
    %v1914 = vunpack.c.l.b16 %v1402
    %v1915 = vunpack.c.l.b16 %v1403
    %v1916 = vunpack.c.l.b16 %v1404
    %v1917 = vunpack.c.l.b16 %v1405
    %v1918 = vunpack.c.l.b16 %v1406
    %v1919 = vunpack.c.l.b16 %v1407
    %v1920 = vunpack.c.l.b16 %v1408
    %v1921 = vunpack.c.l.b16 %v1409
    %v1922 = vunpack.c.l.b16 %v1410
    %v1923 = vunpack.c.l.b16 %v1411
    %v1924 = vunpack.c.l.b16 %v1412
    %v1925 = vunpack.c.l.b16 %v1413
    %v1926 = vunpack.c.l.b16 %v1414
    %v1927 = vunpack.c.l.b16 %v1415
    %v1928 = vunpack.c.l.b16 %v1416
    %v1929 = vunpack.c.l.b16 %v1417
    %v1930 = vunpack.c.l.b16 %v1418
    %v1931 = vunpack.c.l.b16 %v1419
    %v1932 = vunpack.c.l.b16 %v1420
    %v1933 = vunpack.c.l.b16 %v1421
    %v1934 = vunpack.c.l.b16 %v1422
    %v1935 = vunpack.c.l.b16 %v1423
    %v1936 = vunpack.c.l.b16 %v1424
    %v1937 = vunpack.c.l.b16 %v1425
    %v1938 = vunpack.c.l.b16 %v1426
    %v1939 = vunpack.c.l.b16 %v1427
    %v1940 = vunpack.c.l.b16 %v1428
    %v1941 = vunpack.c.l.b16 %v1429
    %v1942 = vunpack.c.l.b16 %v1430
    %v1943 = vunpack.c.l.b16 %v1431
    %v1944 = vunpack.c.l.b16 %v1432
    %v1945 = vunpack.c.l.b16 %v1433
    %v1946 = vunpack.c.l.b16 %v1434
    %v1947 = vunpack.c.l.b16 %v1435
    %v1948 = vunpack.c.l.b16 %v1436
    %v1949 = vunpack.c.l.b16 %v1437
    %v1950 = vunpack.c.l.b16 %v1438
    %v1951 = vunpack.c.l.b16 %v1439
    %v1952 = vunpack.c.l.b16 %v1440
    %v1953 = vunpack.c.l.b16 %v1441
    %v1954 = vunpack.c.l.b16 %v1442
    %v1955 = vunpack.c.l.b16 %v1443
    %v1956 = vunpack.c.l.b16 %v1444
    %v1957 = vunpack.c.l.b16 %v1445
    %v1958 = vunpack.c.l.b16 %v1446
    %v1959 = vunpack.c.l.b16 %v1447
    %v1960 = vunpack.c.l.b16 %v1448
    %v1961 = vunpack.c.l.b16 %v1449
    %v1962 = vunpack.c.l.b16 %v1450
    %v1963 = vunpack.c.l.b16 %v1451
    %v1964 = vunpack.c.l.b16 %v1452
    %v1965 = vunpack.c.l.b16 %v1453
    %v1966 = vunpack.c.l.b16 %v1454
    %v1967 = vunpack.c.l.b16 %v1455
    %v1968 = vunpack.c.l.b16 %v1456
    %v1969 = vunpack.c.l.b16 %v1457
    %v1970 = vunpack.c.l.b16 %v1458
    %v1971 = vunpack.c.l.b16 %v1459
    %v1972 = vunpack.c.l.b16 %v1460
    %v1973 = vunpack.c.l.b16 %v1461
    %v1974 = vunpack.c.l.b16 %v1462
    %v1975 = vunpack.c.l.b16 %v1463
    %v1976 = vunpack.c.l.b16 %v1464
    %v1977 = vunpack.c.l.b16 %v1465
    %v1978 = vunpack.c.l.b16 %v1466
    %v1979 = vunpack.c.l.b16 %v1467
    %v1980 = vunpack.c.l.b16 %v1468
    %v1981 = vunpack.c.l.b16 %v1469
    %v1982 = vunpack.c.l.b16 %v1470
    %v1983 = vunpack.c.l.b16 %v1471
    %v1984 = vunpack.c.l.b16 %v1472
    %v1985 = vunpack.c.l.b16 %v1473
    %v1986 = vunpack.c.l.b16 %v1474
    %v1987 = vunpack.c.l.b16 %v1475
    %v1988 = vunpack.c.l.b16 %v1476
    %v1989 = vunpack.c.l.b16 %v1477
    %v1990 = vunpack.c.l.b16 %v1478
    %v1991 = vunpack.c.l.b16 %v1479
    %v1992 = vunpack.c.l.b16 %v1480
    %v1993 = vunpack.c.l.b16 %v1481
    %v1994 = vunpack.c.l.b16 %v1482
    %v1995 = vunpack.c.l.b16 %v1483
    %v1996 = vunpack.c.l.b16 %v1484
    %v1997 = vunpack.c.l.b16 %v1485
    %v1998 = vunpack.c.l.b16 %v1486
    %v1999 = vunpack.c.l.b16 %v1487
    %v2000 = vunpack.c.l.b16 %v1488
    %v2001 = vunpack.c.l.b16 %v1489
    %v2002 = vunpack.c.l.b16 %v1490
    %v2003 = vunpack.c.l.b16 %v1491
    %v2004 = vunpack.c.l.b16 %v1492
    %v2005 = vunpack.c.l.b16 %v1493
    %v2006 = vunpack.c.l.b16 %v1494
    %v2007 = vunpack.c.l.b16 %v1495
    %v2008 = vunpack.c.l.b16 %v1496
    %v2009 = vunpack.c.l.b16 %v1497
    %v2010 = vunpack.c.l.b16 %v1498
    %v2011 = vunpack.c.l.b16 %v1499
    %v2012 = vunpack.c.l.b16 %v1500
    %v2013 = vunpack.c.l.b16 %v1501
    %v2014 = vunpack.c.l.b16 %v1502
    %v2015 = vunpack.c.l.b16 %v1503
    %v2016 = vunpack.c.l.b16 %v1504
    %v2017 = vunpack.c.l.b16 %v1505
    %v2018 = vunpack.c.l.b16 %v1506
    %v2019 = vunpack.c.l.b16 %v1507
    %v2020 = vunpack.c.l.b16 %v1508
    %v2021 = vunpack.c.l.b16 %v1509
    %v2022 = vunpack.c.l.b16 %v1510
    %v2023 = vunpack.c.l.b16 %v1511
    %v2024 = vpack.c.b16 %v1769, %v1768
    %v2025 = vpack.c.b16 %v1771, %v1770
    %v2026 = vpack.c.b16 %v1773, %v1772
    %v2027 = vpack.c.b16 %v1775, %v1774
    %v2028 = vpack.c.b16 %v1777, %v1776
    %v2029 = vpack.c.b16 %v1779, %v1778
    %v2030 = vpack.c.b16 %v1781, %v1780
    %v2031 = vpack.c.b16 %v1783, %v1782
    %v2032 = vpack.c.b16 %v1785, %v1784
    %v2033 = vpack.c.b16 %v1787, %v1786
    %v2034 = vpack.c.b16 %v1789, %v1788
    %v2035 = vpack.c.b16 %v1791, %v1790
    %v2036 = vpack.c.b16 %v1793, %v1792
    %v2037 = vpack.c.b16 %v1795, %v1794
    %v2038 = vpack.c.b16 %v1797, %v1796
    %v2039 = vpack.c.b16 %v1799, %v1798
    %v2040 = vpack.c.b16 %v1801, %v1800
    %v2041 = vpack.c.b16 %v1803, %v1802
    %v2042 = vpack.c.b16 %v1805, %v1804
    %v2043 = vpack.c.b16 %v1807, %v1806
    %v2044 = vpack.c.b16 %v1809, %v1808
    %v2045 = vpack.c.b16 %v1811, %v1810
    %v2046 = vpack.c.b16 %v1813, %v1812
    %v2047 = vpack.c.b16 %v1815, %v1814
    %v2048 = vpack.c.b16 %v1817, %v1816
    %v2049 = vpack.c.b16 %v1819, %v1818
    %v2050 = vpack.c.b16 %v1821, %v1820
    %v2051 = vpack.c.b16 %v1823, %v1822
    %v2052 = vpack.c.b16 %v1825, %v1824
    %v2053 = vpack.c.b16 %v1827, %v1826
    %v2054 = vpack.c.b16 %v1829, %v1828
    %v2055 = vpack.c.b16 %v1831, %v1830
    %v2056 = vpack.c.b16 %v1833, %v1832
    %v2057 = vpack.c.b16 %v1835, %v1834
    %v2058 = vpack.c.b16 %v1837, %v1836
    %v2059 = vpack.c.b16 %v1839, %v1838
    %v2060 = vpack.c.b16 %v1841, %v1840
    %v2061 = vpack.c.b16 %v1843, %v1842
    %v2062 = vpack.c.b16 %v1845, %v1844
    %v2063 = vpack.c.b16 %v1847, %v1846
    %v2064 = vpack.c.b16 %v1849, %v1848
    %v2065 = vpack.c.b16 %v1851, %v1850
    %v2066 = vpack.c.b16 %v1853, %v1852
    %v2067 = vpack.c.b16 %v1855, %v1854
    %v2068 = vpack.c.b16 %v1857, %v1856
    %v2069 = vpack.c.b16 %v1859, %v1858
    %v2070 = vpack.c.b16 %v1861, %v1860
    %v2071 = vpack.c.b16 %v1863, %v1862
    %v2072 = vpack.c.b16 %v1865, %v1864
    %v2073 = vpack.c.b16 %v1867, %v1866
    %v2074 = vpack.c.b16 %v1869, %v1868
    %v2075 = vpack.c.b16 %v1871, %v1870
    %v2076 = vpack.c.b16 %v1873, %v1872
    %v2077 = vpack.c.b16 %v1875, %v1874
    %v2078 = vpack.c.b16 %v1877, %v1876
    %v2079 = vpack.c.b16 %v1879, %v1878
    %v2080 = vpack.c.b16 %v1881, %v1880
    %v2081 = vpack.c.b16 %v1883, %v1882
    %v2082 = vpack.c.b16 %v1885, %v1884
    %v2083 = vpack.c.b16 %v1887, %v1886
    %v2084 = vpack.c.b16 %v1889, %v1888
    %v2085 = vpack.c.b16 %v1891, %v1890
    %v2086 = vpack.c.b16 %v1893, %v1892
    %v2087 = vpack.c.b16 %v1895, %v1894
    %v2088 = vpack.c.b16 %v1897, %v1896
    %v2089 = vpack.c.b16 %v1899, %v1898
    %v2090 = vpack.c.b16 %v1901, %v1900
    %v2091 = vpack.c.b16 %v1903, %v1902
    %v2092 = vpack.c.b16 %v1905, %v1904
    %v2093 = vpack.c.b16 %v1907, %v1906
    %v2094 = vpack.c.b16 %v1909, %v1908
    %v2095 = vpack.c.b16 %v1911, %v1910
    %v2096 = vpack.c.b16 %v1913, %v1912
    %v2097 = vpack.c.b16 %v1915, %v1914
    %v2098 = vpack.c.b16 %v1917, %v1916
    %v2099 = vpack.c.b16 %v1919, %v1918
    %v2100 = vpack.c.b16 %v1921, %v1920
    %v2101 = vpack.c.b16 %v1923, %v1922
    %v2102 = vpack.c.b16 %v1925, %v1924
    %v2103 = vpack.c.b16 %v1927, %v1926
    %v2104 = vpack.c.b16 %v1929, %v1928
    %v2105 = vpack.c.b16 %v1931, %v1930
    %v2106 = vpack.c.b16 %v1933, %v1932
    %v2107 = vpack.c.b16 %v1935, %v1934
    %v2108 = vpack.c.b16 %v1937, %v1936
    %v2109 = vpack.c.b16 %v1939, %v1938
    %v2110 = vpack.c.b16 %v1941, %v1940
    %v2111 = vpack.c.b16 %v1943, %v1942
    %v2112 = vpack.c.b16 %v1945, %v1944
    %v2113 = vpack.c.b16 %v1947, %v1946
    %v2114 = vpack.c.b16 %v1949, %v1948
    %v2115 = vpack.c.b16 %v1951, %v1950
    %v2116 = vpack.c.b16 %v1953, %v1952
    %v2117 = vpack.c.b16 %v1955, %v1954
    %v2118 = vpack.c.b16 %v1957, %v1956
    %v2119 = vpack.c.b16 %v1959, %v1958
    %v2120 = vpack.c.b16 %v1961, %v1960
    %v2121 = vpack.c.b16 %v1963, %v1962
    %v2122 = vpack.c.b16 %v1965, %v1964
    %v2123 = vpack.c.b16 %v1967, %v1966
    %v2124 = vpack.c.b16 %v1969, %v1968
    %v2125 = vpack.c.b16 %v1971, %v1970
    %v2126 = vpack.c.b16 %v1973, %v1972
    %v2127 = vpack.c.b16 %v1975, %v1974
    %v2128 = vpack.c.b16 %v1977, %v1976
    %v2129 = vpack.c.b16 %v1979, %v1978
    %v2130 = vpack.c.b16 %v1981, %v1980
    %v2131 = vpack.c.b16 %v1983, %v1982
    %v2132 = vpack.c.b16 %v1985, %v1984
    %v2133 = vpack.c.b16 %v1987, %v1986
    %v2134 = vpack.c.b16 %v1989, %v1988
    %v2135 = vpack.c.b16 %v1991, %v1990
    %v2136 = vpack.c.b16 %v1993, %v1992
    %v2137 = vpack.c.b16 %v1995, %v1994
    %v2138 = vpack.c.b16 %v1997, %v1996
    %v2139 = vpack.c.b16 %v1999, %v1998
    %v2140 = vpack.c.b16 %v2001, %v2000
    %v2141 = vpack.c.b16 %v2003, %v2002
    %v2142 = vpack.c.b16 %v2005, %v2004
    %v2143 = vpack.c.b16 %v2007, %v2006
    %v2144 = vpack.c.b16 %v2009, %v2008
    %v2145 = vpack.c.b16 %v2011, %v2010
    %v2146 = vpack.c.b16 %v2013, %v2012
    %v2147 = vpack.c.b16 %v2015, %v2014
    %v2148 = vpack.c.b16 %v2017, %v2016
    %v2149 = vpack.c.b16 %v2019, %v2018
    %v2150 = vpack.c.b16 %v2021, %v2020
    %v2151 = vpack.c.b16 %v2023, %v2022
    %2280 = vmatpush.bf16.msra.mxu0 %v2031
    %2281 = vmatpush.bf16.msra.mxu0 %v2030
    %2282 = vmatpush.bf16.msra.mxu0 %v2029
    %2283 = vmatpush.bf16.msra.mxu0 %v2028
    %2284 = vmatpush.bf16.msra.mxu0 %v2027
    %2285 = vmatpush.bf16.msra.mxu0 %v2026
    %2286 = vmatpush.bf16.msra.mxu0 %v2025
    %2287 = vmatpush.bf16.msra.mxu0 %v2024
    %2288 = vmatmul.bf16.gmra.mxu0 %v1240
    %v2289 = vpop.f32.mrf.mxu0
    %v2290 = vadd.f32 0.0, %v2289
    %v2291 = vpop.f32.mrf.mxu0
    %2292 = vdwg.mxu0
    %2293 = vmatpush.bf16.msra.mxu0 %v2039
    %2294 = vmatpush.bf16.msra.mxu0 %v2038
    %2295 = vmatpush.bf16.msra.mxu0 %v2037
    %2296 = vmatpush.bf16.msra.mxu0 %v2036
    %2297 = vmatpush.bf16.msra.mxu0 %v2035
    %2298 = vmatpush.bf16.msra.mxu0 %v2034
    %2299 = vmatpush.bf16.msra.mxu0 %v2033
    %2300 = vmatpush.bf16.msra.mxu0 %v2032
    %2301 = vmatmul.bf16.gmra.mxu0 %v1241
    %v2302 = vpop.f32.mrf.mxu0
    %v2303 = vadd.f32 %v2290, %v2302
    %v2304 = vpop.f32.mrf.mxu0
    %2305 = vdwg.mxu0
    %2306 = vmatpush.bf16.msra.mxu0 %v2047
    %2307 = vmatpush.bf16.msra.mxu0 %v2046
    %2308 = vmatpush.bf16.msra.mxu0 %v2045
    %2309 = vmatpush.bf16.msra.mxu0 %v2044
    %2310 = vmatpush.bf16.msra.mxu0 %v2043
    %2311 = vmatpush.bf16.msra.mxu0 %v2042
    %2312 = vmatpush.bf16.msra.mxu0 %v2041
    %2313 = vmatpush.bf16.msra.mxu0 %v2040
    %2314 = vmatmul.bf16.gmra.mxu0 %v1242
    %v2315 = vpop.f32.mrf.mxu0
    %v2316 = vadd.f32 %v2303, %v2315
    %v2317 = vpop.f32.mrf.mxu0
    %2318 = vdwg.mxu0
    %2319 = vmatpush.bf16.msra.mxu0 %v2055
    %2320 = vmatpush.bf16.msra.mxu0 %v2054
    %2321 = vmatpush.bf16.msra.mxu0 %v2053
    %2322 = vmatpush.bf16.msra.mxu0 %v2052
    %2323 = vmatpush.bf16.msra.mxu0 %v2051
    %2324 = vmatpush.bf16.msra.mxu0 %v2050
    %2325 = vmatpush.bf16.msra.mxu0 %v2049
    %2326 = vmatpush.bf16.msra.mxu0 %v2048
    %2327 = vmatmul.bf16.gmra.mxu0 %v1243
    %v2328 = vpop.f32.mrf.mxu0
    %v2329 = vadd.f32 %v2316, %v2328
    %v2330 = vpop.f32.mrf.mxu0
    %2331 = vdwg.mxu0
    %2332 = vmatpush.bf16.msra.mxu0 %v2063
    %2333 = vmatpush.bf16.msra.mxu0 %v2062
    %2334 = vmatpush.bf16.msra.mxu0 %v2061
    %2335 = vmatpush.bf16.msra.mxu0 %v2060
    %2336 = vmatpush.bf16.msra.mxu0 %v2059
    %2337 = vmatpush.bf16.msra.mxu0 %v2058
    %2338 = vmatpush.bf16.msra.mxu0 %v2057
    %2339 = vmatpush.bf16.msra.mxu0 %v2056
    %2340 = vmatmul.bf16.gmra.mxu0 %v1244
    %v2341 = vpop.f32.mrf.mxu0
    %v2342 = vadd.f32 %v2329, %v2341
    %v2343 = vpop.f32.mrf.mxu0
    %2344 = vdwg.mxu0
    %2345 = vmatpush.bf16.msra.mxu0 %v2071
    %2346 = vmatpush.bf16.msra.mxu0 %v2070
    %2347 = vmatpush.bf16.msra.mxu0 %v2069
    %2348 = vmatpush.bf16.msra.mxu0 %v2068
    %2349 = vmatpush.bf16.msra.mxu0 %v2067
    %2350 = vmatpush.bf16.msra.mxu0 %v2066
    %2351 = vmatpush.bf16.msra.mxu0 %v2065
    %2352 = vmatpush.bf16.msra.mxu0 %v2064
    %2353 = vmatmul.bf16.gmra.mxu0 %v1245
    %v2354 = vpop.f32.mrf.mxu0
    %v2355 = vadd.f32 %v2342, %v2354
    %v2356 = vpop.f32.mrf.mxu0
    %2357 = vdwg.mxu0
    %2358 = vmatpush.bf16.msra.mxu0 %v2079
    %2359 = vmatpush.bf16.msra.mxu0 %v2078
    %2360 = vmatpush.bf16.msra.mxu0 %v2077
    %2361 = vmatpush.bf16.msra.mxu0 %v2076
    %2362 = vmatpush.bf16.msra.mxu0 %v2075
    %2363 = vmatpush.bf16.msra.mxu0 %v2074
    %2364 = vmatpush.bf16.msra.mxu0 %v2073
    %2365 = vmatpush.bf16.msra.mxu0 %v2072
    %2366 = vmatmul.bf16.gmra.mxu0 %v1246
    %v2367 = vpop.f32.mrf.mxu0
    %v2368 = vadd.f32 %v2355, %v2367
    %v2369 = vpop.f32.mrf.mxu0
    %2370 = vdwg.mxu0
    %2371 = vmatpush.bf16.msra.mxu0 %v2087
    %2372 = vmatpush.bf16.msra.mxu0 %v2086
    %2373 = vmatpush.bf16.msra.mxu0 %v2085
    %2374 = vmatpush.bf16.msra.mxu0 %v2084
    %2375 = vmatpush.bf16.msra.mxu0 %v2083
    %2376 = vmatpush.bf16.msra.mxu0 %v2082
    %2377 = vmatpush.bf16.msra.mxu0 %v2081
    %2378 = vmatpush.bf16.msra.mxu0 %v2080
    %2379 = vmatmul.bf16.gmra.mxu0 %v1247
    %v2380 = vpop.f32.mrf.mxu0
    %v2381 = vadd.f32 %v2368, %v2380
    %v2382 = vpop.f32.mrf.mxu0
    %2383 = vdwg.mxu0
    %2384 = vmatpush.bf16.msra.mxu0 %v2095
    %2385 = vmatpush.bf16.msra.mxu0 %v2094
    %2386 = vmatpush.bf16.msra.mxu0 %v2093
    %2387 = vmatpush.bf16.msra.mxu0 %v2092
    %2388 = vmatpush.bf16.msra.mxu0 %v2091
    %2389 = vmatpush.bf16.msra.mxu0 %v2090
    %2390 = vmatpush.bf16.msra.mxu0 %v2089
    %2391 = vmatpush.bf16.msra.mxu0 %v2088
    %2392 = vmatmul.bf16.gmra.mxu0 %v1248
    %v2393 = vpop.f32.mrf.mxu0
    %v2394 = vadd.f32 %v2381, %v2393
    %v2395 = vpop.f32.mrf.mxu0
    %2396 = vdwg.mxu0
    %2397 = vmatpush.bf16.msra.mxu0 %v2103
    %2398 = vmatpush.bf16.msra.mxu0 %v2102
    %2399 = vmatpush.bf16.msra.mxu0 %v2101
    %2400 = vmatpush.bf16.msra.mxu0 %v2100
    %2401 = vmatpush.bf16.msra.mxu0 %v2099
    %2402 = vmatpush.bf16.msra.mxu0 %v2098
    %2403 = vmatpush.bf16.msra.mxu0 %v2097
    %2404 = vmatpush.bf16.msra.mxu0 %v2096
    %2405 = vmatmul.bf16.gmra.mxu0 %v1249
    %v2406 = vpop.f32.mrf.mxu0
    %v2407 = vadd.f32 %v2394, %v2406
    %v2408 = vpop.f32.mrf.mxu0
    %2409 = vdwg.mxu0
    %2410 = vmatpush.bf16.msra.mxu0 %v2111
    %2411 = vmatpush.bf16.msra.mxu0 %v2110
    %2412 = vmatpush.bf16.msra.mxu0 %v2109
    %2413 = vmatpush.bf16.msra.mxu0 %v2108
    %2414 = vmatpush.bf16.msra.mxu0 %v2107
    %2415 = vmatpush.bf16.msra.mxu0 %v2106
    %2416 = vmatpush.bf16.msra.mxu0 %v2105
    %2417 = vmatpush.bf16.msra.mxu0 %v2104
    %2418 = vmatmul.bf16.gmra.mxu0 %v1250
    %v2419 = vpop.f32.mrf.mxu0
    %v2420 = vadd.f32 %v2407, %v2419
    %v2421 = vpop.f32.mrf.mxu0
    %2422 = vdwg.mxu0
    %2423 = vmatpush.bf16.msra.mxu0 %v2119
    %2424 = vmatpush.bf16.msra.mxu0 %v2118
    %2425 = vmatpush.bf16.msra.mxu0 %v2117
    %2426 = vmatpush.bf16.msra.mxu0 %v2116
    %2427 = vmatpush.bf16.msra.mxu0 %v2115
    %2428 = vmatpush.bf16.msra.mxu0 %v2114
    %2429 = vmatpush.bf16.msra.mxu0 %v2113
    %2430 = vmatpush.bf16.msra.mxu0 %v2112
    %2431 = vmatmul.bf16.gmra.mxu0 %v1251
    %v2432 = vpop.f32.mrf.mxu0
    %v2433 = vadd.f32 %v2420, %v2432
    %v2434 = vpop.f32.mrf.mxu0
    %2435 = vdwg.mxu0
    %2436 = vmatpush.bf16.msra.mxu0 %v2127
    %2437 = vmatpush.bf16.msra.mxu0 %v2126
    %2438 = vmatpush.bf16.msra.mxu0 %v2125
    %2439 = vmatpush.bf16.msra.mxu0 %v2124
    %2440 = vmatpush.bf16.msra.mxu0 %v2123
    %2441 = vmatpush.bf16.msra.mxu0 %v2122
    %2442 = vmatpush.bf16.msra.mxu0 %v2121
    %2443 = vmatpush.bf16.msra.mxu0 %v2120
    %2444 = vmatmul.bf16.gmra.mxu0 %v1252
    %v2445 = vpop.f32.mrf.mxu0
    %v2446 = vadd.f32 %v2433, %v2445
    %v2447 = vpop.f32.mrf.mxu0
    %2448 = vdwg.mxu0
    %2449 = vmatpush.bf16.msra.mxu0 %v2135
    %2450 = vmatpush.bf16.msra.mxu0 %v2134
    %2451 = vmatpush.bf16.msra.mxu0 %v2133
    %2452 = vmatpush.bf16.msra.mxu0 %v2132
    %2453 = vmatpush.bf16.msra.mxu0 %v2131
    %2454 = vmatpush.bf16.msra.mxu0 %v2130
    %2455 = vmatpush.bf16.msra.mxu0 %v2129
    %2456 = vmatpush.bf16.msra.mxu0 %v2128
    %2457 = vmatmul.bf16.gmra.mxu0 %v1253
    %v2458 = vpop.f32.mrf.mxu0
    %v2459 = vadd.f32 %v2446, %v2458
    %v2460 = vpop.f32.mrf.mxu0
    %2461 = vdwg.mxu0
    %2462 = vmatpush.bf16.msra.mxu0 %v2143
    %2463 = vmatpush.bf16.msra.mxu0 %v2142
    %2464 = vmatpush.bf16.msra.mxu0 %v2141
    %2465 = vmatpush.bf16.msra.mxu0 %v2140
    %2466 = vmatpush.bf16.msra.mxu0 %v2139
    %2467 = vmatpush.bf16.msra.mxu0 %v2138
    %2468 = vmatpush.bf16.msra.mxu0 %v2137
    %2469 = vmatpush.bf16.msra.mxu0 %v2136
    %2470 = vmatmul.bf16.gmra.mxu0 %v1254
    %v2471 = vpop.f32.mrf.mxu0
    %v2472 = vadd.f32 %v2459, %v2471
    %v2473 = vpop.f32.mrf.mxu0
    %2474 = vdwg.mxu0
    %2475 = vmatpush.bf16.msra.mxu0 %v2151
    %2476 = vmatpush.bf16.msra.mxu0 %v2150
    %2477 = vmatpush.bf16.msra.mxu0 %v2149
    %2478 = vmatpush.bf16.msra.mxu0 %v2148
    %2479 = vmatpush.bf16.msra.mxu0 %v2147
    %2480 = vmatpush.bf16.msra.mxu0 %v2146
    %2481 = vmatpush.bf16.msra.mxu0 %v2145
    %2482 = vmatpush.bf16.msra.mxu0 %v2144
    %2483 = vmatmul.bf16.gmra.mxu0 %v1255
    %v2484 = vpop.f32.mrf.mxu0
    %v2485 = vadd.f32 %v2472, %v2484
    %v2486 = vpop.f32.mrf.mxu0
    %2487 = vdwg.mxu0
    %v2489 = vrot.slane %v2485, 2
    %2491 = vst [vmem:[#allocation3] sm:$0x3] %v2485
    %2492 = vst [vmem:[#allocation3 + $0x2] sm:$0x3] %v2489
    %v2493 = vld [vmem:[%s7] sm:$0xff]
    %v2494 = vld [vmem:[%s7 + $0x8] sm:$0xff]
    %v2495 = vld [vmem:[%s7 + $0x10] sm:$0xff]
    %v2496 = vld [vmem:[%s7 + $0x18] sm:$0xff]
    %v2497 = vld [vmem:[%s8] sm:$0x1]
    %v2498 = vld [vmem:[#allocation3] sm:$0x3]
    %v2500 = vsel %vm699, 0.0, 0
    %2502 = vmatpush.msra.mxu0 0.0
    %2503 = vmatpush.msra.mxu0 0.0
    %2504 = vmatpush.msra.mxu0 0.0
    %2505 = vmatpush.msra.mxu0 0.0
    %2506 = vmatpush.msra.mxu0 0.0
    %2507 = vmatpush.msra.mxu0 0.0
    %2508 = vmatpush.msra.mxu0 0.0
    %2509 = vmatpush.msra.mxu0 0.0
    %2510 = vmatpush.msra.mxu0 0.0
    %2511 = vmatpush.msra.mxu0 0.0
    %2512 = vmatpush.msra.mxu0 0.0
    %2513 = vmatpush.msra.mxu0 0.0
    %2514 = vmatpush.msra.mxu0 %v2496
    %2515 = vmatpush.msra.mxu0 %v2495
    %2516 = vmatpush.msra.mxu0 %v2494
    %2517 = vmatpush.msra.mxu0 %v2493
    %2518 = vmatmul.f32.gmra.mxu0 %v2500
    %v2519 = vpop.f32.mrf.mxu0
    %v2520 = vadd.f32 0.0, %v2519
    %2521 = vdwg.mxu0
    %v2522 = vadd.f32 %v2498, %v2520
    %v2524 = vperm.slane %v2497, 0
    %v2526 = vadd.f32 %v2522, %v2524
    %v2527 = vsub.f32 0.0, %v2526
    %v2528 = vmul.f32 %v2527, 1.442695
    %v2529 = vpow.pop %v2528
    %v2530 = vadd.f32 %v2529, 1.0
    %v2531 = vrcp.pop %v2530
    %v2532 = vtanh.pop %v2526
    %v2533 = vmul.f32 %v2531, 0.0
    %2535 = vrot.lane.b32.xlu0 %v2532, 64
    %v2536 = vpop.permute.xlu0 %2535
    %v2538 = vmul.f32 %v2531, %v2536
    %2540 = vrot.lane.b32.xlu0 %v2538, 32
    %v2541 = vpop.permute.xlu0 %2540
    %v2543 = vadd.f32 %v2533, %v2541
    %v2544 = vtanh.pop %v2543
    %2546 = vrot.lane.b32.xlu0 %v2544, 64
    %v2547 = vpop.permute.xlu0 %2546
    %v2549 = vmul.f32 %v2531, %v2547
    %s2550 = scalar_lea.vmem [#allocation3], 2
    %v2551 = vld [vmem:[%s2550] sm:$0x3]
    %2553 = vrot.lane.b32.xlu0 %v2549, 32
    %v2554 = vpop.permute.xlu0 %2553
    %v2555 = vsel %vm699, %v2554, 0
    %2557 = vmatpush.msra.mxu0 0.0
    %2558 = vmatpush.msra.mxu0 0.0
    %2559 = vmatpush.msra.mxu0 0.0
    %2560 = vmatpush.msra.mxu0 0.0
    %2561 = vmatpush.msra.mxu0 0.0
    %2562 = vmatpush.msra.mxu0 0.0
    %2563 = vmatpush.msra.mxu0 0.0
    %2564 = vmatpush.msra.mxu0 0.0
    %2565 = vmatpush.msra.mxu0 0.0
    %2566 = vmatpush.msra.mxu0 0.0
    %2567 = vmatpush.msra.mxu0 0.0
    %2568 = vmatpush.msra.mxu0 0.0
    %2569 = vmatpush.msra.mxu0 %v2496
    %2570 = vmatpush.msra.mxu0 %v2495
    %2571 = vmatpush.msra.mxu0 %v2494
    %2572 = vmatpush.msra.mxu0 %v2493
    %2573 = vmatmul.f32.gmra.mxu0 %v2555
    %v2574 = vpop.f32.mrf.mxu0
    %v2575 = vadd.f32 0.0, %v2574
    %2576 = vdwg.mxu0
    %v2577 = vadd.f32 %v2551, %v2575
    %v2578 = vadd.f32 %v2577, %v2524
    %v2579 = vsub.f32 0.0, %v2578
    %v2580 = vmul.f32 %v2579, 1.442695
    %v2581 = vpow.pop %v2580
    %v2582 = vadd.f32 %v2581, 1.0
    %v2583 = vrcp.pop %v2582
    %v2584 = vtanh.pop %v2578
    %v2585 = vmul.f32 %v2583, %v2543
    %2587 = vrot.lane.b32.xlu0 %v2584, 64
    %v2588 = vpop.permute.xlu0 %2587
    %v2590 = vmul.f32 %v2583, %v2588
    %2592 = vrot.lane.b32.xlu0 %v2590, 32
    %v2593 = vpop.permute.xlu0 %2592
    %v2595 = vadd.f32 %v2585, %v2593
    %v2596 = vtanh.pop %v2595
    %2598 = vrot.lane.b32.xlu0 %v2596, 64
    %v2599 = vpop.permute.xlu0 %2598
    %v2601 = vmul.f32 %v2583, %v2599
    %v2602 = vld [vmem:[%s9] sm:$0xff]
    %v2603 = vld [vmem:[%s9 + $0x8] sm:$0xff]
    %v2604 = vld [vmem:[%s9 + $0x10] sm:$0xff]
    %v2605 = vld [vmem:[%s9 + $0x18] sm:$0xff]
    %v2606 = vld [vmem:[%s10] sm:$0x1]
    %v2608 = vperm.slane %v2606, 0
    %2611 = vrot.lane.b32.xlu0 %v2601, 32
    %v2612 = vpop.permute.xlu0 %2611
    %v2613 = vsel %vm699, %v2612, 0
    %2615 = vmatpush.msra.mxu0 0.0
    %2616 = vmatpush.msra.mxu0 0.0
    %2617 = vmatpush.msra.mxu0 0.0
    %2618 = vmatpush.msra.mxu0 0.0
    %2619 = vmatpush.msra.mxu0 0.0
    %2620 = vmatpush.msra.mxu0 0.0
    %2621 = vmatpush.msra.mxu0 0.0
    %2622 = vmatpush.msra.mxu0 0.0
    %2623 = vmatpush.msra.mxu0 0.0
    %2624 = vmatpush.msra.mxu0 0.0
    %2625 = vmatpush.msra.mxu0 0.0
    %2626 = vmatpush.msra.mxu0 0.0
    %2627 = vmatpush.msra.mxu0 %v2605
    %2628 = vmatpush.msra.mxu0 %v2604
    %2629 = vmatpush.msra.mxu0 %v2603
    %2630 = vmatpush.msra.mxu0 %v2602
    %2631 = vmatmul.f32.gmra.mxu0 %v2613
    %v2632 = vpop.f32.mrf.mxu0
    %v2633 = vadd.f32 %v2608, %v2632
    %2634 = vdwg.mxu0
    %2635 = vst [vmem:[#allocation4] sm:$0x3] %v2633
    // Predicated region
    $region46: #{vip_features_forward.1} parent=1 // pred_check
      _
    $region47: #{vip_features_forward.1} parent=1 // pred_check_branch
      %2637 = sbr.rel (0) target = $region49
    $region48: #{vip_features_forward.1} parent=1 // pred_region
      %2639 = vsyncadd [#allocation5], 0
      %s2641 = sshll.u32 [#allocation4], 4
      %s2642 = int_to_ptr.vmem [resolvable:$true] %s2641
      %s2643 = sshll.u32 %s11, 4
      %s2644 = int_to_ptr.hbm [resolvable:$true] %s2643
      %2646 = dma.vmem_to_hbm [thread:$0]  %s2642, 32, %s2644, [#allocation5]
    $region49: #{vip_features_forward.1} parent=1 // pred_fallthru
      _
    // Predicated region
    $region50: #{vip_features_forward.1} parent=1 // pred_check
      _
    $region51: #{vip_features_forward.1} parent=1 // pred_check_branch
      %2648 = sbr.rel (0) target = $region53
    $region52: #{vip_features_forward.1} parent=1 // pred_region
      %2650 = dma.done [#allocation5], 32
    $region53: #{vip_features_forward.1} parent=1 // pred_fallthru
      _
    %2651 = vsyncpa [#allocation5], 1

</llo_original>
